<compile_context>
chip_gen: v7x
topology: tpu7x:2x2x1
jax: 0.10.0
libtpu: 0.0.40
codegen_flags: <defaults>
</compile_context>

<pallas_src>
import functools
import math

import jax
import jax.numpy as jnp
from jax.experimental import pallas as pl
from jax.experimental.pallas import tpu as pltpu


def conv3x3_tanh_kernel(x_hbm_ref, wb_ref, o_ref, xc_ref, xl_ref, xr_ref,
                        dma_sem, *, H, W, Cin, Cout, PAD):
    """3x3 same-padding conv + bias + tanh, spatial flattened on the lane axis.

    x_hbm_ref : [Cin, H*W]            ANY (HBM)  flattened CHW input, manual DMA
    wb_ref    : [Cout, Cin*9 + 1] f32 VMEM       weight[co, ci*9+kh*3+kw]; last col = bias
    o_ref     : [Cout, H*W]       f32 VMEM
    xc_ref    : [Cin, H*W + 2*PAD]    VMEM scratch  zero-padded flat x
    xl_ref    : [Cin, H*W + 2*PAD]    VMEM scratch  same, source column W-1 zeroed (dw=-1)
    xr_ref    : [Cin, H*W + 2*PAD]    VMEM scratch  same, source column 0   zeroed (dw=+1)
    dma_sem   : DMA semaphore
    """
    N = H * W
    f32 = jnp.float32
    pad_zeros = jnp.zeros((Cin, PAD), f32)

    # Zero xc's pad lanes before starting the DMA, so no local store touches
    # xc while the copy into its interior is in flight.
    xc_ref[:, 0:PAD] = pad_zeros
    xc_ref[:, PAD + N:PAD + N + PAD] = pad_zeros

    # Land the input directly in the interior of the padded center buffer.
    cp = pltpu.make_async_copy(x_hbm_ref, xc_ref.at[:, PAD:PAD + N], dma_sem)
    cp.start()

    # While the DMA is in flight: zero the pads of the column-masked copies and
    # build the one-time column-keep masks.  Row masks are unnecessary: the
    # >= W+1 zero pad already returns 0 for every dh=+/-1 read that falls off
    # the top/bottom edge.
    xl_ref[:, 0:PAD] = pad_zeros
    xl_ref[:, PAD + N:PAD + N + PAD] = pad_zeros
    xr_ref[:, 0:PAD] = pad_zeros
    xr_ref[:, PAD + N:PAD + N + PAD] = pad_zeros

    col = jax.lax.broadcasted_iota(jnp.int32, (1, N), 1) % W
    keep_l = col != (W - 1)   # dw = -1 taps: zero the wrapped-in source column W-1
    keep_r = col != 0         # dw = +1 taps: zero the wrapped-in source column 0

    cp.wait()

    x = xc_ref[:, PAD:PAD + N]                               # [Cin, N]
    xl_ref[:, PAD:PAD + N] = jnp.where(keep_l, x, 0.0)
    xr_ref[:, PAD:PAD + N] = jnp.where(keep_r, x, 0.0)

    # All Cout channels together; bias column initializes one partial accumulator.
    bias_col = wb_ref[:, Cin * 9:Cin * 9 + 1]                # [Cout, 1]
    acc0 = jnp.zeros((Cout, N), f32) + bias_col
    acc1 = jnp.zeros((Cout, N), f32)

    bufs = {-1: xl_ref, 0: xc_ref, 1: xr_ref}
    parity = 0
    for kh in range(3):
        dh = kh - 1
        for kw in range(3):
            dw = kw - 1
            buf = bufs[dw]
            base = PAD + dh * W + dw
            for ci in range(Cin):
                k = ci * 9 + kh * 3 + kw
                wcol = wb_ref[:, k:k + 1]                    # [Cout, 1] lane-broadcast
                tap = buf[ci:ci + 1, base:base + N]          # [1, N] pure static slice
                if parity == 0:
                    acc0 = acc0 + wcol * tap
                else:
                    acc1 = acc1 + wcol * tap
                parity ^= 1

    o_ref[...] = jnp.tanh(acc0 + acc1)


def image_extractor_forward(x_chw, weight_oihw, bias):
    """x_chw: [Cin, H, W]; weight_oihw: [Cout, Cin, 3, 3]; bias: [Cout] -> [3, H, W]."""
    Cin, H, W = x_chw.shape
    Cout = weight_oihw.shape[0]
    N = H * W
    # Pad >= W+1 (max |flattened tap offset|), rounded to 128 lanes so the DMA
    # destination and the pad-zero stores are lane-aligned.
    PAD = ((W + 1 + 127) // 128) * 128

    # Only contiguous (bitcast) reshapes here -- no transposes, no host padding.
    x_flat = x_chw.astype(jnp.float32).reshape(Cin, N)
    w_flat = weight_oihw.astype(jnp.float32).reshape(Cout, Cin * 9)
    wb = jnp.concatenate([w_flat, bias.astype(jnp.float32)[:, None]], axis=1)  # [Cout, Cin*9+1]

    kern = functools.partial(conv3x3_tanh_kernel,
                             H=H, W=W, Cin=Cin, Cout=Cout, PAD=PAD)

    out_flat = pl.pallas_call(
        kern,
        out_shape=jax.ShapeDtypeStruct((Cout, N), jnp.float32),
        in_specs=[
            pl.BlockSpec(memory_space=pl.ANY),                  # x stays in HBM; manual DMA
            pl.BlockSpec(memory_space=pltpu.MemorySpace.VMEM),  # weights+bias tile
        ],
        out_specs=pl.BlockSpec(memory_space=pltpu.MemorySpace.VMEM),
        scratch_shapes=[
            pltpu.VMEM((Cin, N + 2 * PAD), jnp.float32),        # center (unmasked)
            pltpu.VMEM((Cin, N + 2 * PAD), jnp.float32),        # col W-1 zeroed (dw=-1)
            pltpu.VMEM((Cin, N + 2 * PAD), jnp.float32),        # col 0   zeroed (dw=+1)
            pltpu.SemaphoreType.DMA,
        ],
    )(x_flat, wb)

    return out_flat.reshape(Cout, H, W)   # free bitcast back to [Cout, H, W]


def _reference(x_chw, weight_oihw, bias):
    out = jax.lax.conv_general_dilated(
        x_chw[None].astype(jnp.float32),
        weight_oihw.astype(jnp.float32),
        window_strides=(1, 1),
        padding=((1, 1), (1, 1)),
        dimension_numbers=("NCHW", "OIHW", "NCHW"),
    )[0]
    return jnp.tanh(out + bias[:, None, None])


if __name__ == "__main__":
    in_chans, out_chans, H, W = 4, 3, 16, 16

    key = jax.random.PRNGKey(0)
    kx, kw, kb = jax.random.split(key, 3)

    # Deterministic parameter init mimicking nn.Conv2d defaults
    # (uniform(-1/sqrt(fan_in), 1/sqrt(fan_in)), fan_in = in_chans * 3 * 3).
    fan_in = in_chans * 3 * 3
    bound = 1.0 / math.sqrt(fan_in)
    weight = jax.random.uniform(
        kw, (out_chans, in_chans, 3, 3), jnp.float32, -bound, bound
    )
    bias = jax.random.uniform(kb, (out_chans,), jnp.float32, -bound, bound)

    x = jax.random.normal(kx, (in_chans, H, W), jnp.float32)  # [C, H, W]

    out = jax.block_until_ready(image_extractor_forward(x, weight, bias))
    ref = jax.block_until_ready(_reference(x, weight, bias))

    assert out.shape == (out_chans, H, W), out.shape
    assert jnp.allclose(out, ref, atol=1e-5, rtol=1e-5), float(
        jnp.max(jnp.abs(out - ref))
    )

    print("KERNEL_OK")
</pallas_src>

<mosaic_0001>
module attributes {stable_mosaic.version = 11 : i64} {
  func.func @conv3x3_tanh_kernel(%arg0: memref<4x256xf32, #tpu.memory_space<any>>, %arg1: memref<3x37xf32, #tpu.memory_space<vmem>>, %arg2: memref<3x256xf32, #tpu.memory_space<vmem>>, %arg3: memref<4x512xf32, #tpu.memory_space<vmem>>, %arg4: memref<4x512xf32, #tpu.memory_space<vmem>>, %arg5: memref<4x512xf32, #tpu.memory_space<vmem>>, %arg6: memref<!tpu.dma_semaphore, #tpu.memory_space<semaphore_mem>>) attributes {dimension_semantics = [], scalar_prefetch = 0 : i64, scratch_operands = 4 : i64, tpu.core_type = #tpu.core_type<tc>} {
    %cst = arith.constant 0.000000e+00 : f32
    %0 = vector.broadcast %cst : f32 to vector<4x128xf32>
    %c0 = arith.constant 0 : index
    %c0_0 = arith.constant 0 : index
    %1 = vector.load %arg3[%c0, %c0_0] : memref<4x512xf32, #tpu.memory_space<vmem>>, vector<4x128xf32>
    tpu.vector_store %arg3[%c0, %c0_0], %0 {strides = array<i32>} : memref<4x512xf32, #tpu.memory_space<vmem>>, vector<4x128xf32>,
    %c0_1 = arith.constant 0 : index
    %c384 = arith.constant 384 : index
    %2 = vector.load %arg3[%c0_1, %c384] : memref<4x512xf32, #tpu.memory_space<vmem>>, vector<4x128xf32>
    tpu.vector_store %arg3[%c0_1, %c384], %0 {strides = array<i32>} : memref<4x512xf32, #tpu.memory_space<vmem>>, vector<4x128xf32>,
    %c0_i32 = arith.constant 0 : i32
    %c128_i32 = arith.constant 128 : i32
    %3 = tpu.memref_slice %arg3[%c0_i32, %c128_i32] : memref<4x512xf32, #tpu.memory_space<vmem>> -> memref<4x256xf32, #tpu.memory_space<vmem>>
    tpu.enqueue_dma source(%arg0 : memref<4x256xf32, #tpu.memory_space<any>>) target(%3 : memref<4x256xf32, #tpu.memory_space<vmem>>) target_semaphore(%arg6 : memref<!tpu.dma_semaphore, #tpu.memory_space<semaphore_mem>>)
    %c0_2 = arith.constant 0 : index
    %c0_3 = arith.constant 0 : index
    %4 = vector.load %arg4[%c0_2, %c0_3] : memref<4x512xf32, #tpu.memory_space<vmem>>, vector<4x128xf32>
    tpu.vector_store %arg4[%c0_2, %c0_3], %0 {strides = array<i32>} : memref<4x512xf32, #tpu.memory_space<vmem>>, vector<4x128xf32>,
    %c0_4 = arith.constant 0 : index
    %c384_5 = arith.constant 384 : index
    %5 = vector.load %arg4[%c0_4, %c384_5] : memref<4x512xf32, #tpu.memory_space<vmem>>, vector<4x128xf32>
    tpu.vector_store %arg4[%c0_4, %c384_5], %0 {strides = array<i32>} : memref<4x512xf32, #tpu.memory_space<vmem>>, vector<4x128xf32>,
    %c0_6 = arith.constant 0 : index
    %c0_7 = arith.constant 0 : index
    %6 = vector.load %arg5[%c0_6, %c0_7] : memref<4x512xf32, #tpu.memory_space<vmem>>, vector<4x128xf32>
    tpu.vector_store %arg5[%c0_6, %c0_7], %0 {strides = array<i32>} : memref<4x512xf32, #tpu.memory_space<vmem>>, vector<4x128xf32>,
    %c0_8 = arith.constant 0 : index
    %c384_9 = arith.constant 384 : index
    %7 = vector.load %arg5[%c0_8, %c384_9] : memref<4x512xf32, #tpu.memory_space<vmem>>, vector<4x128xf32>
    tpu.vector_store %arg5[%c0_8, %c384_9], %0 {strides = array<i32>} : memref<4x512xf32, #tpu.memory_space<vmem>>, vector<4x128xf32>,
    %8 = tpu.iota {dimensions = array<i32: 1>} : vector<1x256xi32>
    %c16_i32 = arith.constant 16 : i32
    %c0_i32_10 = arith.constant 0 : i32
    %9 = arith.cmpi eq, %c16_i32, %c0_i32_10 : i32
    %c1_i32 = arith.constant 1 : i32
    %10 = arith.select %9, %c1_i32, %c16_i32 : i32
    %11 = vector.broadcast %10 : i32 to vector<1x256xi32>
    %12 = arith.remsi %8, %11 : vector<1x256xi32>
    %c0_i32_11 = arith.constant 0 : i32
    %13 = vector.broadcast %c0_i32_11 : i32 to vector<1x256xi32>
    %14 = arith.cmpi ne, %12, %13 : vector<1x256xi32>
    %c0_i32_12 = arith.constant 0 : i32
    %15 = vector.broadcast %c0_i32_12 : i32 to vector<1x256xi32>
    %16 = arith.cmpi slt, %12, %15 : vector<1x256xi32>
    %c0_i32_13 = arith.constant 0 : i32
    %17 = arith.cmpi slt, %10, %c0_i32_13 : i32
    %18 = vector.broadcast %17 : i1 to vector<1x256xi1>
    %19 = vector.broadcast %18 : vector<1x256xi1> to vector<1x256xi1>
    %20 = arith.xori %16, %19 : vector<1x256xi1>
    %21 = arith.andi %20, %14 : vector<1x256xi1>
    %22 = vector.broadcast %10 : i32 to vector<1x256xi32>
    %23 = arith.addi %12, %22 : vector<1x256xi32>
    %24 = arith.select %21, %23, %12 : vector<1x256xi1>, vector<1x256xi32>
    %c15_i32 = arith.constant 15 : i32
    %25 = vector.broadcast %c15_i32 : i32 to vector<1x256xi32>
    %26 = arith.cmpi ne, %24, %25 : vector<1x256xi32>
    %c0_i32_14 = arith.constant 0 : i32
    %27 = vector.broadcast %c0_i32_14 : i32 to vector<1x256xi32>
    %28 = arith.cmpi ne, %24, %27 : vector<1x256xi32>
    %c0_i32_15 = arith.constant 0 : i32
    %c128_i32_16 = arith.constant 128 : i32
    %29 = tpu.memref_slice %arg3[%c0_i32_15, %c128_i32_16] : memref<4x512xf32, #tpu.memory_space<vmem>> -> memref<4x256xf32, #tpu.memory_space<vmem>>
    tpu.wait_dma2 semaphore(%arg6 : memref<!tpu.dma_semaphore, #tpu.memory_space<semaphore_mem>>) src(%arg0 : memref<4x256xf32, #tpu.memory_space<any>>) dst(%29 : memref<4x256xf32, #tpu.memory_space<vmem>>)
    %c0_17 = arith.constant 0 : index
    %c128 = arith.constant 128 : index
    %30 = vector.load %arg3[%c0_17, %c128] : memref<4x512xf32, #tpu.memory_space<vmem>>, vector<4x256xf32>
    %cst_18 = arith.constant 0.000000e+00 : f32
    %31 = vector.shape_cast %26 : vector<1x256xi1> to vector<1x256xi1>
    %32 = vector.broadcast %31 : vector<1x256xi1> to vector<4x256xi1>
    %33 = vector.broadcast %cst_18 : f32 to vector<4x256xf32>
    %34 = arith.select %32, %30, %33 : vector<4x256xi1>, vector<4x256xf32>
    %c0_19 = arith.constant 0 : index
    %c128_20 = arith.constant 128 : index
    %35 = vector.load %arg4[%c0_19, %c128_20] : memref<4x512xf32, #tpu.memory_space<vmem>>, vector<4x256xf32>
    tpu.vector_store %arg4[%c0_19, %c128_20], %34 {strides = array<i32>} : memref<4x512xf32, #tpu.memory_space<vmem>>, vector<4x256xf32>,
    %cst_21 = arith.constant 0.000000e+00 : f32
    %36 = vector.shape_cast %28 : vector<1x256xi1> to vector<1x256xi1>
    %37 = vector.broadcast %36 : vector<1x256xi1> to vector<4x256xi1>
    %38 = vector.broadcast %cst_21 : f32 to vector<4x256xf32>
    %39 = arith.select %37, %30, %38 : vector<4x256xi1>, vector<4x256xf32>
    %c0_22 = arith.constant 0 : index
    %c128_23 = arith.constant 128 : index
    %40 = vector.load %arg5[%c0_22, %c128_23] : memref<4x512xf32, #tpu.memory_space<vmem>>, vector<4x256xf32>
    tpu.vector_store %arg5[%c0_22, %c128_23], %39 {strides = array<i32>} : memref<4x512xf32, #tpu.memory_space<vmem>>, vector<4x256xf32>,
    %c0_24 = arith.constant 0 : index
    %c36 = arith.constant 36 : index
    %41 = vector.load %arg1[%c0_24, %c36] : memref<3x37xf32, #tpu.memory_space<vmem>>, vector<3x1xf32>
    %cst_25 = arith.constant 0.000000e+00 : f32
    %42 = vector.broadcast %cst_25 : f32 to vector<3x256xf32>
    %43 = vector.broadcast %41 : vector<3x1xf32> to vector<3x256xf32>
    %44 = arith.addf %42, %43 : vector<3x256xf32>
    %cst_26 = arith.constant 0.000000e+00 : f32
    %45 = vector.broadcast %cst_26 : f32 to vector<3x256xf32>
    %c0_27 = arith.constant 0 : index
    %c0_28 = arith.constant 0 : index
    %46 = vector.load %arg1[%c0_27, %c0_28] : memref<3x37xf32, #tpu.memory_space<vmem>>, vector<3x1xf32>
    %c0_29 = arith.constant 0 : index
    %c111 = arith.constant 111 : index
    %47 = vector.load %arg4[%c0_29, %c111] : memref<4x512xf32, #tpu.memory_space<vmem>>, vector<1x256xf32>
    %48 = vector.broadcast %46 : vector<3x1xf32> to vector<3x256xf32>
    %49 = vector.broadcast %47 : vector<1x256xf32> to vector<3x256xf32>
    %50 = arith.mulf %48, %49 : vector<3x256xf32>
    %51 = arith.addf %44, %50 : vector<3x256xf32>
    %c0_30 = arith.constant 0 : index
    %c9 = arith.constant 9 : index
    %52 = vector.load %arg1[%c0_30, %c9] : memref<3x37xf32, #tpu.memory_space<vmem>>, vector<3x1xf32>
    %c1 = arith.constant 1 : index
    %c111_31 = arith.constant 111 : index
    %53 = vector.load %arg4[%c1, %c111_31] : memref<4x512xf32, #tpu.memory_space<vmem>>, vector<1x256xf32>
    %54 = vector.broadcast %52 : vector<3x1xf32> to vector<3x256xf32>
    %55 = vector.broadcast %53 : vector<1x256xf32> to vector<3x256xf32>
    %56 = arith.mulf %54, %55 : vector<3x256xf32>
    %57 = arith.addf %45, %56 : vector<3x256xf32>
    %c0_32 = arith.constant 0 : index
    %c18 = arith.constant 18 : index
    %58 = vector.load %arg1[%c0_32, %c18] : memref<3x37xf32, #tpu.memory_space<vmem>>, vector<3x1xf32>
    %c2 = arith.constant 2 : index
    %c111_33 = arith.constant 111 : index
    %59 = vector.load %arg4[%c2, %c111_33] : memref<4x512xf32, #tpu.memory_space<vmem>>, vector<1x256xf32>
    %60 = vector.broadcast %58 : vector<3x1xf32> to vector<3x256xf32>
    %61 = vector.broadcast %59 : vector<1x256xf32> to vector<3x256xf32>
    %62 = arith.mulf %60, %61 : vector<3x256xf32>
    %63 = arith.addf %51, %62 : vector<3x256xf32>
    %c0_34 = arith.constant 0 : index
    %c27 = arith.constant 27 : index
    %64 = vector.load %arg1[%c0_34, %c27] : memref<3x37xf32, #tpu.memory_space<vmem>>, vector<3x1xf32>
    %c3 = arith.constant 3 : index
    %c111_35 = arith.constant 111 : index
    %65 = vector.load %arg4[%c3, %c111_35] : memref<4x512xf32, #tpu.memory_space<vmem>>, vector<1x256xf32>
    %66 = vector.broadcast %64 : vector<3x1xf32> to vector<3x256xf32>
    %67 = vector.broadcast %65 : vector<1x256xf32> to vector<3x256xf32>
    %68 = arith.mulf %66, %67 : vector<3x256xf32>
    %69 = arith.addf %57, %68 : vector<3x256xf32>
    %c0_36 = arith.constant 0 : index
    %c1_37 = arith.constant 1 : index
    %70 = vector.load %arg1[%c0_36, %c1_37] : memref<3x37xf32, #tpu.memory_space<vmem>>, vector<3x1xf32>
    %c0_38 = arith.constant 0 : index
    %c112 = arith.constant 112 : index
    %71 = vector.load %arg3[%c0_38, %c112] : memref<4x512xf32, #tpu.memory_space<vmem>>, vector<1x256xf32>
    %72 = vector.broadcast %70 : vector<3x1xf32> to vector<3x256xf32>
    %73 = vector.broadcast %71 : vector<1x256xf32> to vector<3x256xf32>
    %74 = arith.mulf %72, %73 : vector<3x256xf32>
    %75 = arith.addf %63, %74 : vector<3x256xf32>
    %c0_39 = arith.constant 0 : index
    %c10 = arith.constant 10 : index
    %76 = vector.load %arg1[%c0_39, %c10] : memref<3x37xf32, #tpu.memory_space<vmem>>, vector<3x1xf32>
    %c1_40 = arith.constant 1 : index
    %c112_41 = arith.constant 112 : index
    %77 = vector.load %arg3[%c1_40, %c112_41] : memref<4x512xf32, #tpu.memory_space<vmem>>, vector<1x256xf32>
    %78 = vector.broadcast %76 : vector<3x1xf32> to vector<3x256xf32>
    %79 = vector.broadcast %77 : vector<1x256xf32> to vector<3x256xf32>
    %80 = arith.mulf %78, %79 : vector<3x256xf32>
    %81 = arith.addf %69, %80 : vector<3x256xf32>
    %c0_42 = arith.constant 0 : index
    %c19 = arith.constant 19 : index
    %82 = vector.load %arg1[%c0_42, %c19] : memref<3x37xf32, #tpu.memory_space<vmem>>, vector<3x1xf32>
    %c2_43 = arith.constant 2 : index
    %c112_44 = arith.constant 112 : index
    %83 = vector.load %arg3[%c2_43, %c112_44] : memref<4x512xf32, #tpu.memory_space<vmem>>, vector<1x256xf32>
    %84 = vector.broadcast %82 : vector<3x1xf32> to vector<3x256xf32>
    %85 = vector.broadcast %83 : vector<1x256xf32> to vector<3x256xf32>
    %86 = arith.mulf %84, %85 : vector<3x256xf32>
    %87 = arith.addf %75, %86 : vector<3x256xf32>
    %c0_45 = arith.constant 0 : index
    %c28 = arith.constant 28 : index
    %88 = vector.load %arg1[%c0_45, %c28] : memref<3x37xf32, #tpu.memory_space<vmem>>, vector<3x1xf32>
    %c3_46 = arith.constant 3 : index
    %c112_47 = arith.constant 112 : index
    %89 = vector.load %arg3[%c3_46, %c112_47] : memref<4x512xf32, #tpu.memory_space<vmem>>, vector<1x256xf32>
    %90 = vector.broadcast %88 : vector<3x1xf32> to vector<3x256xf32>
    %91 = vector.broadcast %89 : vector<1x256xf32> to vector<3x256xf32>
    %92 = arith.mulf %90, %91 : vector<3x256xf32>
    %93 = arith.addf %81, %92 : vector<3x256xf32>
    %c0_48 = arith.constant 0 : index
    %c2_49 = arith.constant 2 : index
    %94 = vector.load %arg1[%c0_48, %c2_49] : memref<3x37xf32, #tpu.memory_space<vmem>>, vector<3x1xf32>
    %c0_50 = arith.constant 0 : index
    %c113 = arith.constant 113 : index
    %95 = vector.load %arg5[%c0_50, %c113] : memref<4x512xf32, #tpu.memory_space<vmem>>, vector<1x256xf32>
    %96 = vector.broadcast %94 : vector<3x1xf32> to vector<3x256xf32>
    %97 = vector.broadcast %95 : vector<1x256xf32> to vector<3x256xf32>
    %98 = arith.mulf %96, %97 : vector<3x256xf32>
    %99 = arith.addf %87, %98 : vector<3x256xf32>
    %c0_51 = arith.constant 0 : index
    %c11 = arith.constant 11 : index
    %100 = vector.load %arg1[%c0_51, %c11] : memref<3x37xf32, #tpu.memory_space<vmem>>, vector<3x1xf32>
    %c1_52 = arith.constant 1 : index
    %c113_53 = arith.constant 113 : index
    %101 = vector.load %arg5[%c1_52, %c113_53] : memref<4x512xf32, #tpu.memory_space<vmem>>, vector<1x256xf32>
    %102 = vector.broadcast %100 : vector<3x1xf32> to vector<3x256xf32>
    %103 = vector.broadcast %101 : vector<1x256xf32> to vector<3x256xf32>
    %104 = arith.mulf %102, %103 : vector<3x256xf32>
    %105 = arith.addf %93, %104 : vector<3x256xf32>
    %c0_54 = arith.constant 0 : index
    %c20 = arith.constant 20 : index
    %106 = vector.load %arg1[%c0_54, %c20] : memref<3x37xf32, #tpu.memory_space<vmem>>, vector<3x1xf32>
    %c2_55 = arith.constant 2 : index
    %c113_56 = arith.constant 113 : index
    %107 = vector.load %arg5[%c2_55, %c113_56] : memref<4x512xf32, #tpu.memory_space<vmem>>, vector<1x256xf32>
    %108 = vector.broadcast %106 : vector<3x1xf32> to vector<3x256xf32>
    %109 = vector.broadcast %107 : vector<1x256xf32> to vector<3x256xf32>
    %110 = arith.mulf %108, %109 : vector<3x256xf32>
    %111 = arith.addf %99, %110 : vector<3x256xf32>
    %c0_57 = arith.constant 0 : index
    %c29 = arith.constant 29 : index
    %112 = vector.load %arg1[%c0_57, %c29] : memref<3x37xf32, #tpu.memory_space<vmem>>, vector<3x1xf32>
    %c3_58 = arith.constant 3 : index
    %c113_59 = arith.constant 113 : index
    %113 = vector.load %arg5[%c3_58, %c113_59] : memref<4x512xf32, #tpu.memory_space<vmem>>, vector<1x256xf32>
    %114 = vector.broadcast %112 : vector<3x1xf32> to vector<3x256xf32>
    %115 = vector.broadcast %113 : vector<1x256xf32> to vector<3x256xf32>
    %116 = arith.mulf %114, %115 : vector<3x256xf32>
    %117 = arith.addf %105, %116 : vector<3x256xf32>
    %c0_60 = arith.constant 0 : index
    %c3_61 = arith.constant 3 : index
    %118 = vector.load %arg1[%c0_60, %c3_61] : memref<3x37xf32, #tpu.memory_space<vmem>>, vector<3x1xf32>
    %c0_62 = arith.constant 0 : index
    %c127 = arith.constant 127 : index
    %119 = vector.load %arg4[%c0_62, %c127] : memref<4x512xf32, #tpu.memory_space<vmem>>, vector<1x256xf32>
    %120 = vector.broadcast %118 : vector<3x1xf32> to vector<3x256xf32>
    %121 = vector.broadcast %119 : vector<1x256xf32> to vector<3x256xf32>
    %122 = arith.mulf %120, %121 : vector<3x256xf32>
    %123 = arith.addf %111, %122 : vector<3x256xf32>
    %c0_63 = arith.constant 0 : index
    %c12 = arith.constant 12 : index
    %124 = vector.load %arg1[%c0_63, %c12] : memref<3x37xf32, #tpu.memory_space<vmem>>, vector<3x1xf32>
    %c1_64 = arith.constant 1 : index
    %c127_65 = arith.constant 127 : index
    %125 = vector.load %arg4[%c1_64, %c127_65] : memref<4x512xf32, #tpu.memory_space<vmem>>, vector<1x256xf32>
    %126 = vector.broadcast %124 : vector<3x1xf32> to vector<3x256xf32>
    %127 = vector.broadcast %125 : vector<1x256xf32> to vector<3x256xf32>
    %128 = arith.mulf %126, %127 : vector<3x256xf32>
    %129 = arith.addf %117, %128 : vector<3x256xf32>
    %c0_66 = arith.constant 0 : index
    %c21 = arith.constant 21 : index
    %130 = vector.load %arg1[%c0_66, %c21] : memref<3x37xf32, #tpu.memory_space<vmem>>, vector<3x1xf32>
    %c2_67 = arith.constant 2 : index
    %c127_68 = arith.constant 127 : index
    %131 = vector.load %arg4[%c2_67, %c127_68] : memref<4x512xf32, #tpu.memory_space<vmem>>, vector<1x256xf32>
    %132 = vector.broadcast %130 : vector<3x1xf32> to vector<3x256xf32>
    %133 = vector.broadcast %131 : vector<1x256xf32> to vector<3x256xf32>
    %134 = arith.mulf %132, %133 : vector<3x256xf32>
    %135 = arith.addf %123, %134 : vector<3x256xf32>
    %c0_69 = arith.constant 0 : index
    %c30 = arith.constant 30 : index
    %136 = vector.load %arg1[%c0_69, %c30] : memref<3x37xf32, #tpu.memory_space<vmem>>, vector<3x1xf32>
    %c3_70 = arith.constant 3 : index
    %c127_71 = arith.constant 127 : index
    %137 = vector.load %arg4[%c3_70, %c127_71] : memref<4x512xf32, #tpu.memory_space<vmem>>, vector<1x256xf32>
    %138 = vector.broadcast %136 : vector<3x1xf32> to vector<3x256xf32>
    %139 = vector.broadcast %137 : vector<1x256xf32> to vector<3x256xf32>
    %140 = arith.mulf %138, %139 : vector<3x256xf32>
    %141 = arith.addf %129, %140 : vector<3x256xf32>
    %c0_72 = arith.constant 0 : index
    %c4 = arith.constant 4 : index
    %142 = vector.load %arg1[%c0_72, %c4] : memref<3x37xf32, #tpu.memory_space<vmem>>, vector<3x1xf32>
    %c0_73 = arith.constant 0 : index
    %c128_74 = arith.constant 128 : index
    %143 = vector.load %arg3[%c0_73, %c128_74] : memref<4x512xf32, #tpu.memory_space<vmem>>, vector<1x256xf32>
    %144 = vector.broadcast %142 : vector<3x1xf32> to vector<3x256xf32>
    %145 = vector.broadcast %143 : vector<1x256xf32> to vector<3x256xf32>
    %146 = arith.mulf %144, %145 : vector<3x256xf32>
    %147 = arith.addf %135, %146 : vector<3x256xf32>
    %c0_75 = arith.constant 0 : index
    %c13 = arith.constant 13 : index
    %148 = vector.load %arg1[%c0_75, %c13] : memref<3x37xf32, #tpu.memory_space<vmem>>, vector<3x1xf32>
    %c1_76 = arith.constant 1 : index
    %c128_77 = arith.constant 128 : index
    %149 = vector.load %arg3[%c1_76, %c128_77] : memref<4x512xf32, #tpu.memory_space<vmem>>, vector<1x256xf32>
    %150 = vector.broadcast %148 : vector<3x1xf32> to vector<3x256xf32>
    %151 = vector.broadcast %149 : vector<1x256xf32> to vector<3x256xf32>
    %152 = arith.mulf %150, %151 : vector<3x256xf32>
    %153 = arith.addf %141, %152 : vector<3x256xf32>
    %c0_78 = arith.constant 0 : index
    %c22 = arith.constant 22 : index
    %154 = vector.load %arg1[%c0_78, %c22] : memref<3x37xf32, #tpu.memory_space<vmem>>, vector<3x1xf32>
    %c2_79 = arith.constant 2 : index
    %c128_80 = arith.constant 128 : index
    %155 = vector.load %arg3[%c2_79, %c128_80] : memref<4x512xf32, #tpu.memory_space<vmem>>, vector<1x256xf32>
    %156 = vector.broadcast %154 : vector<3x1xf32> to vector<3x256xf32>
    %157 = vector.broadcast %155 : vector<1x256xf32> to vector<3x256xf32>
    %158 = arith.mulf %156, %157 : vector<3x256xf32>
    %159 = arith.addf %147, %158 : vector<3x256xf32>
    %c0_81 = arith.constant 0 : index
    %c31 = arith.constant 31 : index
    %160 = vector.load %arg1[%c0_81, %c31] : memref<3x37xf32, #tpu.memory_space<vmem>>, vector<3x1xf32>
    %c3_82 = arith.constant 3 : index
    %c128_83 = arith.constant 128 : index
    %161 = vector.load %arg3[%c3_82, %c128_83] : memref<4x512xf32, #tpu.memory_space<vmem>>, vector<1x256xf32>
    %162 = vector.broadcast %160 : vector<3x1xf32> to vector<3x256xf32>
    %163 = vector.broadcast %161 : vector<1x256xf32> to vector<3x256xf32>
    %164 = arith.mulf %162, %163 : vector<3x256xf32>
    %165 = arith.addf %153, %164 : vector<3x256xf32>
    %c0_84 = arith.constant 0 : index
    %c5 = arith.constant 5 : index
    %166 = vector.load %arg1[%c0_84, %c5] : memref<3x37xf32, #tpu.memory_space<vmem>>, vector<3x1xf32>
    %c0_85 = arith.constant 0 : index
    %c129 = arith.constant 129 : index
    %167 = vector.load %arg5[%c0_85, %c129] : memref<4x512xf32, #tpu.memory_space<vmem>>, vector<1x256xf32>
    %168 = vector.broadcast %166 : vector<3x1xf32> to vector<3x256xf32>
    %169 = vector.broadcast %167 : vector<1x256xf32> to vector<3x256xf32>
    %170 = arith.mulf %168, %169 : vector<3x256xf32>
    %171 = arith.addf %159, %170 : vector<3x256xf32>
    %c0_86 = arith.constant 0 : index
    %c14 = arith.constant 14 : index
    %172 = vector.load %arg1[%c0_86, %c14] : memref<3x37xf32, #tpu.memory_space<vmem>>, vector<3x1xf32>
    %c1_87 = arith.constant 1 : index
    %c129_88 = arith.constant 129 : index
    %173 = vector.load %arg5[%c1_87, %c129_88] : memref<4x512xf32, #tpu.memory_space<vmem>>, vector<1x256xf32>
    %174 = vector.broadcast %172 : vector<3x1xf32> to vector<3x256xf32>
    %175 = vector.broadcast %173 : vector<1x256xf32> to vector<3x256xf32>
    %176 = arith.mulf %174, %175 : vector<3x256xf32>
    %177 = arith.addf %165, %176 : vector<3x256xf32>
    %c0_89 = arith.constant 0 : index
    %c23 = arith.constant 23 : index
    %178 = vector.load %arg1[%c0_89, %c23] : memref<3x37xf32, #tpu.memory_space<vmem>>, vector<3x1xf32>
    %c2_90 = arith.constant 2 : index
    %c129_91 = arith.constant 129 : index
    %179 = vector.load %arg5[%c2_90, %c129_91] : memref<4x512xf32, #tpu.memory_space<vmem>>, vector<1x256xf32>
    %180 = vector.broadcast %178 : vector<3x1xf32> to vector<3x256xf32>
    %181 = vector.broadcast %179 : vector<1x256xf32> to vector<3x256xf32>
    %182 = arith.mulf %180, %181 : vector<3x256xf32>
    %183 = arith.addf %171, %182 : vector<3x256xf32>
    %c0_92 = arith.constant 0 : index
    %c32 = arith.constant 32 : index
    %184 = vector.load %arg1[%c0_92, %c32] : memref<3x37xf32, #tpu.memory_space<vmem>>, vector<3x1xf32>
    %c3_93 = arith.constant 3 : index
    %c129_94 = arith.constant 129 : index
    %185 = vector.load %arg5[%c3_93, %c129_94] : memref<4x512xf32, #tpu.memory_space<vmem>>, vector<1x256xf32>
    %186 = vector.broadcast %184 : vector<3x1xf32> to vector<3x256xf32>
    %187 = vector.broadcast %185 : vector<1x256xf32> to vector<3x256xf32>
    %188 = arith.mulf %186, %187 : vector<3x256xf32>
    %189 = arith.addf %177, %188 : vector<3x256xf32>
    %c0_95 = arith.constant 0 : index
    %c6 = arith.constant 6 : index
    %190 = vector.load %arg1[%c0_95, %c6] : memref<3x37xf32, #tpu.memory_space<vmem>>, vector<3x1xf32>
    %c0_96 = arith.constant 0 : index
    %c143 = arith.constant 143 : index
    %191 = vector.load %arg4[%c0_96, %c143] : memref<4x512xf32, #tpu.memory_space<vmem>>, vector<1x256xf32>
    %192 = vector.broadcast %190 : vector<3x1xf32> to vector<3x256xf32>
    %193 = vector.broadcast %191 : vector<1x256xf32> to vector<3x256xf32>
    %194 = arith.mulf %192, %193 : vector<3x256xf32>
    %195 = arith.addf %183, %194 : vector<3x256xf32>
    %c0_97 = arith.constant 0 : index
    %c15 = arith.constant 15 : index
    %196 = vector.load %arg1[%c0_97, %c15] : memref<3x37xf32, #tpu.memory_space<vmem>>, vector<3x1xf32>
    %c1_98 = arith.constant 1 : index
    %c143_99 = arith.constant 143 : index
    %197 = vector.load %arg4[%c1_98, %c143_99] : memref<4x512xf32, #tpu.memory_space<vmem>>, vector<1x256xf32>
    %198 = vector.broadcast %196 : vector<3x1xf32> to vector<3x256xf32>
    %199 = vector.broadcast %197 : vector<1x256xf32> to vector<3x256xf32>
    %200 = arith.mulf %198, %199 : vector<3x256xf32>
    %201 = arith.addf %189, %200 : vector<3x256xf32>
    %c0_100 = arith.constant 0 : index
    %c24 = arith.constant 24 : index
    %202 = vector.load %arg1[%c0_100, %c24] : memref<3x37xf32, #tpu.memory_space<vmem>>, vector<3x1xf32>
    %c2_101 = arith.constant 2 : index
    %c143_102 = arith.constant 143 : index
    %203 = vector.load %arg4[%c2_101, %c143_102] : memref<4x512xf32, #tpu.memory_space<vmem>>, vector<1x256xf32>
    %204 = vector.broadcast %202 : vector<3x1xf32> to vector<3x256xf32>
    %205 = vector.broadcast %203 : vector<1x256xf32> to vector<3x256xf32>
    %206 = arith.mulf %204, %205 : vector<3x256xf32>
    %207 = arith.addf %195, %206 : vector<3x256xf32>
    %c0_103 = arith.constant 0 : index
    %c33 = arith.constant 33 : index
    %208 = vector.load %arg1[%c0_103, %c33] : memref<3x37xf32, #tpu.memory_space<vmem>>, vector<3x1xf32>
    %c3_104 = arith.constant 3 : index
    %c143_105 = arith.constant 143 : index
    %209 = vector.load %arg4[%c3_104, %c143_105] : memref<4x512xf32, #tpu.memory_space<vmem>>, vector<1x256xf32>
    %210 = vector.broadcast %208 : vector<3x1xf32> to vector<3x256xf32>
    %211 = vector.broadcast %209 : vector<1x256xf32> to vector<3x256xf32>
    %212 = arith.mulf %210, %211 : vector<3x256xf32>
    %213 = arith.addf %201, %212 : vector<3x256xf32>
    %c0_106 = arith.constant 0 : index
    %c7 = arith.constant 7 : index
    %214 = vector.load %arg1[%c0_106, %c7] : memref<3x37xf32, #tpu.memory_space<vmem>>, vector<3x1xf32>
    %c0_107 = arith.constant 0 : index
    %c144 = arith.constant 144 : index
    %215 = vector.load %arg3[%c0_107, %c144] : memref<4x512xf32, #tpu.memory_space<vmem>>, vector<1x256xf32>
    %216 = vector.broadcast %214 : vector<3x1xf32> to vector<3x256xf32>
    %217 = vector.broadcast %215 : vector<1x256xf32> to vector<3x256xf32>
    %218 = arith.mulf %216, %217 : vector<3x256xf32>
    %219 = arith.addf %207, %218 : vector<3x256xf32>
    %c0_108 = arith.constant 0 : index
    %c16 = arith.constant 16 : index
    %220 = vector.load %arg1[%c0_108, %c16] : memref<3x37xf32, #tpu.memory_space<vmem>>, vector<3x1xf32>
    %c1_109 = arith.constant 1 : index
    %c144_110 = arith.constant 144 : index
    %221 = vector.load %arg3[%c1_109, %c144_110] : memref<4x512xf32, #tpu.memory_space<vmem>>, vector<1x256xf32>
    %222 = vector.broadcast %220 : vector<3x1xf32> to vector<3x256xf32>
    %223 = vector.broadcast %221 : vector<1x256xf32> to vector<3x256xf32>
    %224 = arith.mulf %222, %223 : vector<3x256xf32>
    %225 = arith.addf %213, %224 : vector<3x256xf32>
    %c0_111 = arith.constant 0 : index
    %c25 = arith.constant 25 : index
    %226 = vector.load %arg1[%c0_111, %c25] : memref<3x37xf32, #tpu.memory_space<vmem>>, vector<3x1xf32>
    %c2_112 = arith.constant 2 : index
    %c144_113 = arith.constant 144 : index
    %227 = vector.load %arg3[%c2_112, %c144_113] : memref<4x512xf32, #tpu.memory_space<vmem>>, vector<1x256xf32>
    %228 = vector.broadcast %226 : vector<3x1xf32> to vector<3x256xf32>
    %229 = vector.broadcast %227 : vector<1x256xf32> to vector<3x256xf32>
    %230 = arith.mulf %228, %229 : vector<3x256xf32>
    %231 = arith.addf %219, %230 : vector<3x256xf32>
    %c0_114 = arith.constant 0 : index
    %c34 = arith.constant 34 : index
    %232 = vector.load %arg1[%c0_114, %c34] : memref<3x37xf32, #tpu.memory_space<vmem>>, vector<3x1xf32>
    %c3_115 = arith.constant 3 : index
    %c144_116 = arith.constant 144 : index
    %233 = vector.load %arg3[%c3_115, %c144_116] : memref<4x512xf32, #tpu.memory_space<vmem>>, vector<1x256xf32>
    %234 = vector.broadcast %232 : vector<3x1xf32> to vector<3x256xf32>
    %235 = vector.broadcast %233 : vector<1x256xf32> to vector<3x256xf32>
    %236 = arith.mulf %234, %235 : vector<3x256xf32>
    %237 = arith.addf %225, %236 : vector<3x256xf32>
    %c0_117 = arith.constant 0 : index
    %c8 = arith.constant 8 : index
    %238 = vector.load %arg1[%c0_117, %c8] : memref<3x37xf32, #tpu.memory_space<vmem>>, vector<3x1xf32>
    %c0_118 = arith.constant 0 : index
    %c145 = arith.constant 145 : index
    %239 = vector.load %arg5[%c0_118, %c145] : memref<4x512xf32, #tpu.memory_space<vmem>>, vector<1x256xf32>
    %240 = vector.broadcast %238 : vector<3x1xf32> to vector<3x256xf32>
    %241 = vector.broadcast %239 : vector<1x256xf32> to vector<3x256xf32>
    %242 = arith.mulf %240, %241 : vector<3x256xf32>
    %243 = arith.addf %231, %242 : vector<3x256xf32>
    %c0_119 = arith.constant 0 : index
    %c17 = arith.constant 17 : index
    %244 = vector.load %arg1[%c0_119, %c17] : memref<3x37xf32, #tpu.memory_space<vmem>>, vector<3x1xf32>
    %c1_120 = arith.constant 1 : index
    %c145_121 = arith.constant 145 : index
    %245 = vector.load %arg5[%c1_120, %c145_121] : memref<4x512xf32, #tpu.memory_space<vmem>>, vector<1x256xf32>
    %246 = vector.broadcast %244 : vector<3x1xf32> to vector<3x256xf32>
    %247 = vector.broadcast %245 : vector<1x256xf32> to vector<3x256xf32>
    %248 = arith.mulf %246, %247 : vector<3x256xf32>
    %249 = arith.addf %237, %248 : vector<3x256xf32>
    %c0_122 = arith.constant 0 : index
    %c26 = arith.constant 26 : index
    %250 = vector.load %arg1[%c0_122, %c26] : memref<3x37xf32, #tpu.memory_space<vmem>>, vector<3x1xf32>
    %c2_123 = arith.constant 2 : index
    %c145_124 = arith.constant 145 : index
    %251 = vector.load %arg5[%c2_123, %c145_124] : memref<4x512xf32, #tpu.memory_space<vmem>>, vector<1x256xf32>
    %252 = vector.broadcast %250 : vector<3x1xf32> to vector<3x256xf32>
    %253 = vector.broadcast %251 : vector<1x256xf32> to vector<3x256xf32>
    %254 = arith.mulf %252, %253 : vector<3x256xf32>
    %255 = arith.addf %243, %254 : vector<3x256xf32>
    %c0_125 = arith.constant 0 : index
    %c35 = arith.constant 35 : index
    %256 = vector.load %arg1[%c0_125, %c35] : memref<3x37xf32, #tpu.memory_space<vmem>>, vector<3x1xf32>
    %c3_126 = arith.constant 3 : index
    %c145_127 = arith.constant 145 : index
    %257 = vector.load %arg5[%c3_126, %c145_127] : memref<4x512xf32, #tpu.memory_space<vmem>>, vector<1x256xf32>
    %258 = vector.broadcast %256 : vector<3x1xf32> to vector<3x256xf32>
    %259 = vector.broadcast %257 : vector<1x256xf32> to vector<3x256xf32>
    %260 = arith.mulf %258, %259 : vector<3x256xf32>
    %261 = arith.addf %249, %260 : vector<3x256xf32>
    %262 = arith.addf %255, %261 : vector<3x256xf32>
    %263 = math.tanh %262 : vector<3x256xf32>
    %c0_128 = arith.constant 0 : index
    %c0_129 = arith.constant 0 : index
    %264 = vector.load %arg2[%c0_128, %c0_129] : memref<3x256xf32, #tpu.memory_space<vmem>>, vector<3x256xf32>
    tpu.vector_store %arg2[%c0_128, %c0_129], %263 {strides = array<i32>} : memref<3x256xf32, #tpu.memory_space<vmem>>, vector<3x256xf32>,
    return
  }
}

</mosaic_0001>

<llo_original>
// kernel: tpu_custom_call.1
$region0: #{tpu_custom_call.1}
  #allocation0 [shape = 'u32[]', space=smem, size = 0x4, offset = 0x4, fixed_abs, tag = 'smem constant byte address 0x4 - core index']
  #allocation1 [shape = 'u32[144,128]{1,0:T(1,128)}', space=vmem, size = 0x12000, scoped, tag = 'internal scratch']
  #allocation2 [shape = 'f32[4,512]{1,0:T(4,128)}', space=vmem, size = 0x2000, scoped, tag = 'scratch operand']
  #allocation3 [shape = 'f32[4,512]{1,0:T(4,128)}', space=vmem, size = 0x2000, scoped, tag = 'scratch operand']
  #allocation4 [shape = 'f32[4,512]{1,0:T(4,128)}', space=vmem, size = 0x2000, scoped, tag = 'scratch operand']
  #allocation5 [shape = 's32[1]{0}', space=sflag, size = 0x4, scoped, tag = 'scratch operand']
  #allocation10 [shape = 's32[]', space=sflag, size = 0x4, offset = 0, fixed_abs, tag = 'sflag constant byte address 0x0 - dummy sync flag']
  #allocation11 [shape = 's32[]', space=sflag, size = 0x4, offset = 0, fixed_abs, tag = 'sflag constant byte address 0x0 - dummy sync flag']
  #allocation12 [shape = 'u32[]', space=smem, size = 0x4, offset = 0x44, fixed_abs, tag = 'smem constant byte address 0x44 - assertion arg 0']
  #allocation13 [shape = 'u32[]', space=smem, size = 0x4, offset = 0x48, fixed_abs, tag = 'smem constant byte address 0x48 - assertion arg 1']
  %s0 = inlined_call_operand.hbm [shape: f32[4,256], index: 0, kind: input, shape index: {}]
  %s1 = inlined_call_operand.hbm [shape: f32[3,37], index: 1, kind: input, shape index: {}]
  %s2 = inlined_call_operand.hbm [shape: f32[3,256], index: 2, kind: output, shape index: {}]
  %s3 = sld [smem:[#allocation0]]
  $region22: #{tpu_custom_call.1} parent=0
    _
  %s5 = ssub.s32 1, %s3
  %s6 = scalar_select 0, %s5, %s3
  $region1: #{tpu_custom_call.1} parent=0
    #allocation6 [shape = 'u8[2048]{0}', space=vmem, size = 0x800, scoped, tag = 'input window, operand 1, single buffered']
    #allocation7 [shape = 's32[1]{0}', space=sflag, size = 0x4, scoped, tag = 'scoped memory for tpu_custom_call.1']
    #allocation8 [shape = 's32[1]{0}', space=sflag, size = 0x4, scoped, tag = 'scoped memory for tpu_custom_call.1']
    #allocation9 [shape = 'u8[4096]{0}', space=vmem, size = 0x1000, scoped, tag = 'output window, operand 0, single buffered']
    %7 = vsyncpa [#allocation7], 0
    %8 = vsyncpa [#allocation8], 0
    // Predicated region
    $region2: #{tpu_custom_call.1} parent=1 // pred_check
      _
    $region3: #{tpu_custom_call.1} parent=1 // pred_check_branch
      %10 = sbr.rel (0) target = $region5
    $region4: #{tpu_custom_call.1} parent=1 // pred_region
      %s12 = ssub.s32 64, 64
      %13 = vsyncadd [#allocation7], %s12
      %s15 = sshll.u32 [#allocation6], 4
      %s16 = int_to_ptr.vmem [resolvable:$true] %s15
      %18 = dma.hbm_to_vmem [thread:$0]  %s1, 64, %s16, [#allocation7]
    $region5: #{tpu_custom_call.1} parent=1 // pred_fallthru
      _
    // Predicated region
    $region6: #{tpu_custom_call.1} parent=1 // pred_check
      _
    $region7: #{tpu_custom_call.1} parent=1 // pred_check_branch
      %20 = sbr.rel (0) target = $region9
    $region8: #{tpu_custom_call.1} parent=1 // pred_region
      %21 = dma.done [#allocation7], 64
    $region9: #{tpu_custom_call.1} parent=1 // pred_fallthru
      _
    %22 = vst [vmem:[#allocation2] sm:$0xf] 0.0
    %23 = vst [vmem:[#allocation2 + $0xc] sm:$0xf] 0.0
    %s24 = scalar_lea.vmem [#allocation2], 4
    // Predicated region
    $region10: #{tpu_custom_call.1} parent=1 // pred_check
      _
    $region11: #{tpu_custom_call.1} parent=1 // pred_check_branch
      %26 = sbr.rel target = $region13
    $region12: #{tpu_custom_call.1} parent=1 // pred_region
      %27 = sst [smem:[#allocation12]] [#allocation11]
      %28 = sst [smem:[#allocation13]] [#allocation10]
    $region13: #{tpu_custom_call.1} parent=1 // pred_fallthru
      _
    %30 = shalt.err (0)
    %s32 = sshll.u32 %s24, 4
    %s33 = int_to_ptr.vmem [resolvable:$true] %s32
    %35 = dma.hbm_to_vmem [thread:$0]  %s0, 128, %s33, [#allocation5]
    %36 = vst [vmem:[#allocation3] sm:$0xf] 0.0
    %37 = vst [vmem:[#allocation3 + $0xc] sm:$0xf] 0.0
    %38 = vst [vmem:[#allocation4] sm:$0xf] 0.0
    %39 = vst [vmem:[#allocation4 + $0xc] sm:$0xf] 0.0
    %v40 = vlaneseq
    %v41 = vand.u32 %v40, 127
    %v42 = vadd.s32 %v41, 128
    %vm43 = vcmp.lt.s32.totalorder %v41, 0
    %v44 = vsub.s32 0, %v41
    %v45 = vsel %vm43, %v44, %v41
    %v46 = vshrl.u32 %v45, 4
    %v47 = vand.u32 %v45, 15
    %v48 = vsub.s32 0, %v47
    %v49 = vsel %vm43, %v48, %v47
    %vm50 = vcmp.lt.s32.totalorder %v42, 0
    %v51 = vsub.s32 0, %v42
    %v52 = vsel %vm50, %v51, %v42
    %v53 = vshrl.u32 %v52, 4
    %v54 = vand.u32 %v52, 15
    %v55 = vsub.s32 0, %v54
    %v56 = vsel %vm50, %v55, %v54
    %vm57 = vcmp.ne.s32.totalorder %v49, 0
    %vm58 = vcmp.ne.s32.totalorder %v56, 0
    %vm59 = vcmp.lt.s32.totalorder %v49, 0
    %vm60 = vcmp.lt.s32.totalorder %v56, 0
    %vm61 = vmand %vm59, %vm57
    %vm62 = vmand %vm60, %vm58
    %v63 = vadd.s32 %v49, 16
    %v64 = vadd.s32 %v56, 16
    %v65 = vsel %vm61, %v63, %v49
    %v66 = vsel %vm62, %v64, %v56
    %vm67 = vcmp.ne.s32.totalorder %v65, 15
    %vm68 = vcmp.ne.s32.totalorder %v66, 15
    %vm69 = vcmp.ne.s32.totalorder %v65, 0
    %vm70 = vcmp.ne.s32.totalorder %v66, 0
    %s71 = smul.u32 4, 1
    %s72 = smul.u32 %s71, 2
    %s73 = sshll.u32 %s72, 4
    %74 = dma.done [#allocation5], %s73
    %v75 = vld [vmem:[#allocation2 + $0x4] sm:$0xff]
    %v76 = vsel %vm67, 1, 0
    %v77 = vsel %vm68, 1, 0
    %vm78 = vcmp.eq.s32.totalorder %v76, 1
    %vm79 = vcmp.eq.s32.totalorder %v77, 1
    %v81 = vcombine.high %v75, %v75
    %v83 = vsel %vm78, %v75, 0.0
    %v84 = vsel %vm79, %v81, 0.0
    %v87 = vcombine.low %v83, %v84
    %89 = vst [vmem:[#allocation3 + $0x4] sm:$0xff] %v87
    %v90 = vsel %vm69, 1, 0
    %v91 = vsel %vm70, 1, 0
    %vm92 = vcmp.eq.s32.totalorder %v90, 1
    %vm93 = vcmp.eq.s32.totalorder %v91, 1
    %v94 = vsel %vm92, %v75, 0.0
    %v95 = vsel %vm93, %v81, 0.0
    %v98 = vcombine.low %v94, %v95
    %100 = vst [vmem:[#allocation4 + $0x4] sm:$0xff] %v98
    %v101 = vld [vmem:[#allocation6] sm:$0x7]
    %103 = vset.pattern.permute.xlu0 36
    %104 = vperm.xlu0 %103, %v101
    %v105 = vpop.permute.xlu0 %104
    %v107 = vadd.f32 %v105, 0.0
    %v108 = vld [vmem:[#allocation3] ss:$4 sm:$0x7]
    %109 = vset.pattern.permute.xlu0 0
    %110 = vperm.xlu0 %109, %v101
    %v111 = vpop.permute.xlu0 %110
    %v114 = vlaneseq
    %v115 = vshrl.u32 %v114, 7
    %v116 = vsub.s32 0, %v115
    %v117 = vrot.slane %v108, %v116
    %v118 = vlaneseq
    %v119 = vshrl.u32 %v118, 7
    %v120 = vsub.s32 1, %v119
    %v121 = vrot.slane %v108, %v120
    %v122 = vlaneseq
    %v123 = vshrl.u32 %v122, 7
    %v124 = vsub.s32 2, %v123
    %v125 = vrot.slane %v108, %v124
    %v129 = vmul.f32 %v111, %v117
    %v130 = vmul.f32 %v111, %v121
    %v131 = vmul.f32 %v111, %v125
    %v132 = vadd.f32 %v107, %v129
    %v133 = vadd.f32 %v107, %v130
    %v134 = vadd.f32 %v107, %v131
    %s135 = scalar_lea.vmem [#allocation3], 1
    %v136 = vld [vmem:[%s135] ss:$4 sm:$0x7]
    %137 = vset.pattern.permute.xlu0 9
    %138 = vperm.xlu0 %137, %v101
    %v139 = vpop.permute.xlu0 %138
    %v142 = vlaneseq
    %v143 = vshrl.u32 %v142, 7
    %v144 = vsub.s32 0, %v143
    %v145 = vrot.slane %v136, %v144
    %v146 = vlaneseq
    %v147 = vshrl.u32 %v146, 7
    %v148 = vsub.s32 1, %v147
    %v149 = vrot.slane %v136, %v148
    %v150 = vlaneseq
    %v151 = vshrl.u32 %v150, 7
    %v152 = vsub.s32 2, %v151
    %v153 = vrot.slane %v136, %v152
    %v157 = vmul.f32 %v139, %v145
    %v158 = vmul.f32 %v139, %v149
    %v159 = vmul.f32 %v139, %v153
    %v160 = vadd.f32 %v157, 0.0
    %v161 = vadd.f32 %v158, 0.0
    %v162 = vadd.f32 %v159, 0.0
    %s163 = scalar_lea.vmem [#allocation3], 2
    %v164 = vld [vmem:[%s163] ss:$4 sm:$0x7]
    %165 = vset.pattern.permute.xlu0 18
    %166 = vperm.xlu0 %165, %v101
    %v167 = vpop.permute.xlu0 %166
    %v170 = vlaneseq
    %v171 = vshrl.u32 %v170, 7
    %v172 = vsub.s32 0, %v171
    %v173 = vrot.slane %v164, %v172
    %v174 = vlaneseq
    %v175 = vshrl.u32 %v174, 7
    %v176 = vsub.s32 1, %v175
    %v177 = vrot.slane %v164, %v176
    %v178 = vlaneseq
    %v179 = vshrl.u32 %v178, 7
    %v180 = vsub.s32 2, %v179
    %v181 = vrot.slane %v164, %v180
    %v185 = vmul.f32 %v167, %v173
    %v186 = vmul.f32 %v167, %v177
    %v187 = vmul.f32 %v167, %v181
    %v188 = vadd.f32 %v132, %v185
    %v189 = vadd.f32 %v133, %v186
    %v190 = vadd.f32 %v134, %v187
    %s191 = scalar_lea.vmem [#allocation3], 3
    %v192 = vld [vmem:[%s191] ss:$4 sm:$0x7]
    %193 = vset.pattern.permute.xlu0 27
    %194 = vperm.xlu0 %193, %v101
    %v195 = vpop.permute.xlu0 %194
    %v198 = vlaneseq
    %v199 = vshrl.u32 %v198, 7
    %v200 = vsub.s32 0, %v199
    %v201 = vrot.slane %v192, %v200
    %v202 = vlaneseq
    %v203 = vshrl.u32 %v202, 7
    %v204 = vsub.s32 1, %v203
    %v205 = vrot.slane %v192, %v204
    %v206 = vlaneseq
    %v207 = vshrl.u32 %v206, 7
    %v208 = vsub.s32 2, %v207
    %v209 = vrot.slane %v192, %v208
    %v213 = vmul.f32 %v195, %v201
    %v214 = vmul.f32 %v195, %v205
    %v215 = vmul.f32 %v195, %v209
    %v216 = vadd.f32 %v160, %v213
    %v217 = vadd.f32 %v161, %v214
    %v218 = vadd.f32 %v162, %v215
    %v219 = vld [vmem:[#allocation2] ss:$4 sm:$0x7]
    %220 = vset.pattern.permute.xlu0 1
    %221 = vperm.xlu0 %220, %v101
    %v222 = vpop.permute.xlu0 %221
    %v225 = vlaneseq
    %v226 = vshrl.u32 %v225, 7
    %v227 = vsub.s32 0, %v226
    %v228 = vrot.slane %v219, %v227
    %v229 = vlaneseq
    %v230 = vshrl.u32 %v229, 7
    %v231 = vsub.s32 1, %v230
    %v232 = vrot.slane %v219, %v231
    %v233 = vlaneseq
    %v234 = vshrl.u32 %v233, 7
    %v235 = vsub.s32 2, %v234
    %v236 = vrot.slane %v219, %v235
    %v240 = vmul.f32 %v222, %v228
    %v241 = vmul.f32 %v222, %v232
    %v242 = vmul.f32 %v222, %v236
    %246 = vrot.lane.b32.xlu0 %v240, 127
    %v247 = vpop.permute.xlu0 %246
    %248 = vrot.lane.b32.xlu0 %v241, 127
    %v249 = vpop.permute.xlu0 %248
    %250 = vrot.lane.b32.xlu0 %v242, 127
    %v251 = vpop.permute.xlu0 %250
    %vm252 = vcmask 1039360
    %v253 = vsel %vm252, %v247, %v249
    %v254 = vsel %vm252, %v249, %v251
    %v258 = vadd.f32 %v188, %v253
    %v259 = vadd.f32 %v189, %v254
    %v260 = vadd.f32 %v190, %v251
    %s261 = scalar_lea.vmem [#allocation2], 1
    %v262 = vld [vmem:[%s261] ss:$4 sm:$0x7]
    %263 = vset.pattern.permute.xlu0 10
    %264 = vperm.xlu0 %263, %v101
    %v265 = vpop.permute.xlu0 %264
    %v268 = vlaneseq
    %v269 = vshrl.u32 %v268, 7
    %v270 = vsub.s32 0, %v269
    %v271 = vrot.slane %v262, %v270
    %v272 = vlaneseq
    %v273 = vshrl.u32 %v272, 7
    %v274 = vsub.s32 1, %v273
    %v275 = vrot.slane %v262, %v274
    %v276 = vlaneseq
    %v277 = vshrl.u32 %v276, 7
    %v278 = vsub.s32 2, %v277
    %v279 = vrot.slane %v262, %v278
    %v283 = vmul.f32 %v265, %v271
    %v284 = vmul.f32 %v265, %v275
    %v285 = vmul.f32 %v265, %v279
    %289 = vrot.lane.b32.xlu0 %v283, 127
    %v290 = vpop.permute.xlu0 %289
    %291 = vrot.lane.b32.xlu0 %v284, 127
    %v292 = vpop.permute.xlu0 %291
    %293 = vrot.lane.b32.xlu0 %v285, 127
    %v294 = vpop.permute.xlu0 %293
    %v295 = vsel %vm252, %v290, %v292
    %v296 = vsel %vm252, %v292, %v294
    %v300 = vadd.f32 %v216, %v295
    %v301 = vadd.f32 %v217, %v296
    %v302 = vadd.f32 %v218, %v294
    %s303 = scalar_lea.vmem [#allocation2], 2
    %v304 = vld [vmem:[%s303] ss:$4 sm:$0x7]
    %305 = vset.pattern.permute.xlu0 19
    %306 = vperm.xlu0 %305, %v101
    %v307 = vpop.permute.xlu0 %306
    %v310 = vlaneseq
    %v311 = vshrl.u32 %v310, 7
    %v312 = vsub.s32 0, %v311
    %v313 = vrot.slane %v304, %v312
    %v314 = vlaneseq
    %v315 = vshrl.u32 %v314, 7
    %v316 = vsub.s32 1, %v315
    %v317 = vrot.slane %v304, %v316
    %v318 = vlaneseq
    %v319 = vshrl.u32 %v318, 7
    %v320 = vsub.s32 2, %v319
    %v321 = vrot.slane %v304, %v320
    %v325 = vmul.f32 %v307, %v313
    %v326 = vmul.f32 %v307, %v317
    %v327 = vmul.f32 %v307, %v321
    %331 = vrot.lane.b32.xlu0 %v325, 127
    %v332 = vpop.permute.xlu0 %331
    %333 = vrot.lane.b32.xlu0 %v326, 127
    %v334 = vpop.permute.xlu0 %333
    %335 = vrot.lane.b32.xlu0 %v327, 127
    %v336 = vpop.permute.xlu0 %335
    %v337 = vsel %vm252, %v332, %v334
    %v338 = vsel %vm252, %v334, %v336
    %v342 = vadd.f32 %v258, %v337
    %v343 = vadd.f32 %v259, %v338
    %v344 = vadd.f32 %v260, %v336
    %s345 = scalar_lea.vmem [#allocation2], 3
    %v346 = vld [vmem:[%s345] ss:$4 sm:$0x7]
    %347 = vset.pattern.permute.xlu0 28
    %348 = vperm.xlu0 %347, %v101
    %v349 = vpop.permute.xlu0 %348
    %v352 = vlaneseq
    %v353 = vshrl.u32 %v352, 7
    %v354 = vsub.s32 0, %v353
    %v355 = vrot.slane %v346, %v354
    %v356 = vlaneseq
    %v357 = vshrl.u32 %v356, 7
    %v358 = vsub.s32 1, %v357
    %v359 = vrot.slane %v346, %v358
    %v360 = vlaneseq
    %v361 = vshrl.u32 %v360, 7
    %v362 = vsub.s32 2, %v361
    %v363 = vrot.slane %v346, %v362
    %v367 = vmul.f32 %v349, %v355
    %v368 = vmul.f32 %v349, %v359
    %v369 = vmul.f32 %v349, %v363
    %373 = vrot.lane.b32.xlu0 %v367, 127
    %v374 = vpop.permute.xlu0 %373
    %375 = vrot.lane.b32.xlu0 %v368, 127
    %v376 = vpop.permute.xlu0 %375
    %377 = vrot.lane.b32.xlu0 %v369, 127
    %v378 = vpop.permute.xlu0 %377
    %v379 = vsel %vm252, %v374, %v376
    %v380 = vsel %vm252, %v376, %v378
    %v384 = vadd.f32 %v300, %v379
    %v385 = vadd.f32 %v301, %v380
    %v386 = vadd.f32 %v302, %v378
    %v387 = vld [vmem:[#allocation4] ss:$4 sm:$0x7]
    %388 = vset.pattern.permute.xlu0 2
    %389 = vperm.xlu0 %388, %v101
    %v390 = vpop.permute.xlu0 %389
    %v393 = vlaneseq
    %v394 = vshrl.u32 %v393, 7
    %v395 = vsub.s32 0, %v394
    %v396 = vrot.slane %v387, %v395
    %v397 = vlaneseq
    %v398 = vshrl.u32 %v397, 7
    %v399 = vsub.s32 1, %v398
    %v400 = vrot.slane %v387, %v399
    %v401 = vlaneseq
    %v402 = vshrl.u32 %v401, 7
    %v403 = vsub.s32 2, %v402
    %v404 = vrot.slane %v387, %v403
    %v408 = vmul.f32 %v390, %v396
    %v409 = vmul.f32 %v390, %v400
    %v410 = vmul.f32 %v390, %v404
    %414 = vrot.lane.b32.xlu0 %v408, 126
    %v415 = vpop.permute.xlu0 %414
    %416 = vrot.lane.b32.xlu0 %v409, 126
    %v417 = vpop.permute.xlu0 %416
    %418 = vrot.lane.b32.xlu0 %v410, 126
    %v419 = vpop.permute.xlu0 %418
    %vm420 = vcmask 1031168
    %v421 = vsel %vm420, %v415, %v417
    %v422 = vsel %vm420, %v417, %v419
    %v426 = vadd.f32 %v342, %v421
    %v427 = vadd.f32 %v343, %v422
    %v428 = vadd.f32 %v344, %v419
    %s429 = scalar_lea.vmem [#allocation4], 1
    %v430 = vld [vmem:[%s429] ss:$4 sm:$0x7]
    %431 = vset.pattern.permute.xlu0 11
    %432 = vperm.xlu0 %431, %v101
    %v433 = vpop.permute.xlu0 %432
    %v436 = vlaneseq
    %v437 = vshrl.u32 %v436, 7
    %v438 = vsub.s32 0, %v437
    %v439 = vrot.slane %v430, %v438
    %v440 = vlaneseq
    %v441 = vshrl.u32 %v440, 7
    %v442 = vsub.s32 1, %v441
    %v443 = vrot.slane %v430, %v442
    %v444 = vlaneseq
    %v445 = vshrl.u32 %v444, 7
    %v446 = vsub.s32 2, %v445
    %v447 = vrot.slane %v430, %v446
    %v451 = vmul.f32 %v433, %v439
    %v452 = vmul.f32 %v433, %v443
    %v453 = vmul.f32 %v433, %v447
    %457 = vrot.lane.b32.xlu0 %v451, 126
    %v458 = vpop.permute.xlu0 %457
    %459 = vrot.lane.b32.xlu0 %v452, 126
    %v460 = vpop.permute.xlu0 %459
    %461 = vrot.lane.b32.xlu0 %v453, 126
    %v462 = vpop.permute.xlu0 %461
    %v463 = vsel %vm420, %v458, %v460
    %v464 = vsel %vm420, %v460, %v462
    %v468 = vadd.f32 %v384, %v463
    %v469 = vadd.f32 %v385, %v464
    %v470 = vadd.f32 %v386, %v462
    %s471 = scalar_lea.vmem [#allocation4], 2
    %v472 = vld [vmem:[%s471] ss:$4 sm:$0x7]
    %473 = vset.pattern.permute.xlu0 20
    %474 = vperm.xlu0 %473, %v101
    %v475 = vpop.permute.xlu0 %474
    %v478 = vlaneseq
    %v479 = vshrl.u32 %v478, 7
    %v480 = vsub.s32 0, %v479
    %v481 = vrot.slane %v472, %v480
    %v482 = vlaneseq
    %v483 = vshrl.u32 %v482, 7
    %v484 = vsub.s32 1, %v483
    %v485 = vrot.slane %v472, %v484
    %v486 = vlaneseq
    %v487 = vshrl.u32 %v486, 7
    %v488 = vsub.s32 2, %v487
    %v489 = vrot.slane %v472, %v488
    %v493 = vmul.f32 %v475, %v481
    %v494 = vmul.f32 %v475, %v485
    %v495 = vmul.f32 %v475, %v489
    %499 = vrot.lane.b32.xlu0 %v493, 126
    %v500 = vpop.permute.xlu0 %499
    %501 = vrot.lane.b32.xlu0 %v494, 126
    %v502 = vpop.permute.xlu0 %501
    %503 = vrot.lane.b32.xlu0 %v495, 126
    %v504 = vpop.permute.xlu0 %503
    %v505 = vsel %vm420, %v500, %v502
    %v506 = vsel %vm420, %v502, %v504
    %v510 = vadd.f32 %v426, %v505
    %v511 = vadd.f32 %v427, %v506
    %v512 = vadd.f32 %v428, %v504
    %s513 = scalar_lea.vmem [#allocation4], 3
    %v514 = vld [vmem:[%s513] ss:$4 sm:$0x7]
    %515 = vset.pattern.permute.xlu0 29
    %516 = vperm.xlu0 %515, %v101
    %v517 = vpop.permute.xlu0 %516
    %v520 = vlaneseq
    %v521 = vshrl.u32 %v520, 7
    %v522 = vsub.s32 0, %v521
    %v523 = vrot.slane %v514, %v522
    %v524 = vlaneseq
    %v525 = vshrl.u32 %v524, 7
    %v526 = vsub.s32 1, %v525
    %v527 = vrot.slane %v514, %v526
    %v528 = vlaneseq
    %v529 = vshrl.u32 %v528, 7
    %v530 = vsub.s32 2, %v529
    %v531 = vrot.slane %v514, %v530
    %v535 = vmul.f32 %v517, %v523
    %v536 = vmul.f32 %v517, %v527
    %v537 = vmul.f32 %v517, %v531
    %541 = vrot.lane.b32.xlu0 %v535, 126
    %v542 = vpop.permute.xlu0 %541
    %543 = vrot.lane.b32.xlu0 %v536, 126
    %v544 = vpop.permute.xlu0 %543
    %545 = vrot.lane.b32.xlu0 %v537, 126
    %v546 = vpop.permute.xlu0 %545
    %v547 = vsel %vm420, %v542, %v544
    %v548 = vsel %vm420, %v544, %v546
    %v552 = vadd.f32 %v468, %v547
    %v553 = vadd.f32 %v469, %v548
    %v554 = vadd.f32 %v470, %v546
    %555 = vset.pattern.permute.xlu0 3
    %556 = vperm.xlu0 %555, %v101
    %v557 = vpop.permute.xlu0 %556
    %v559 = vmul.f32 %v557, %v117
    %v560 = vmul.f32 %v557, %v121
    %v561 = vmul.f32 %v557, %v125
    %565 = vrot.lane.b32.xlu0 %v559, 112
    %v566 = vpop.permute.xlu0 %565
    %567 = vrot.lane.b32.xlu0 %v560, 112
    %v568 = vpop.permute.xlu0 %567
    %569 = vrot.lane.b32.xlu0 %v561, 112
    %v570 = vpop.permute.xlu0 %569
    %vm571 = vcmask 916480
    %v572 = vsel %vm571, %v566, %v568
    %v573 = vsel %vm571, %v568, %v570
    %v577 = vadd.f32 %v510, %v572
    %v578 = vadd.f32 %v511, %v573
    %v579 = vadd.f32 %v512, %v570
    %580 = vset.pattern.permute.xlu0 12
    %581 = vperm.xlu0 %580, %v101
    %v582 = vpop.permute.xlu0 %581
    %v584 = vmul.f32 %v582, %v145
    %v585 = vmul.f32 %v582, %v149
    %v586 = vmul.f32 %v582, %v153
    %590 = vrot.lane.b32.xlu0 %v584, 112
    %v591 = vpop.permute.xlu0 %590
    %592 = vrot.lane.b32.xlu0 %v585, 112
    %v593 = vpop.permute.xlu0 %592
    %594 = vrot.lane.b32.xlu0 %v586, 112
    %v595 = vpop.permute.xlu0 %594
    %v596 = vsel %vm571, %v591, %v593
    %v597 = vsel %vm571, %v593, %v595
    %v601 = vadd.f32 %v552, %v596
    %v602 = vadd.f32 %v553, %v597
    %v603 = vadd.f32 %v554, %v595
    %604 = vset.pattern.permute.xlu0 21
    %605 = vperm.xlu0 %604, %v101
    %v606 = vpop.permute.xlu0 %605
    %v608 = vmul.f32 %v606, %v173
    %v609 = vmul.f32 %v606, %v177
    %v610 = vmul.f32 %v606, %v181
    %614 = vrot.lane.b32.xlu0 %v608, 112
    %v615 = vpop.permute.xlu0 %614
    %616 = vrot.lane.b32.xlu0 %v609, 112
    %v617 = vpop.permute.xlu0 %616
    %618 = vrot.lane.b32.xlu0 %v610, 112
    %v619 = vpop.permute.xlu0 %618
    %v620 = vsel %vm571, %v615, %v617
    %v621 = vsel %vm571, %v617, %v619
    %v625 = vadd.f32 %v577, %v620
    %v626 = vadd.f32 %v578, %v621
    %v627 = vadd.f32 %v579, %v619
    %628 = vset.pattern.permute.xlu0 30
    %629 = vperm.xlu0 %628, %v101
    %v630 = vpop.permute.xlu0 %629
    %v632 = vmul.f32 %v630, %v201
    %v633 = vmul.f32 %v630, %v205
    %v634 = vmul.f32 %v630, %v209
    %638 = vrot.lane.b32.xlu0 %v632, 112
    %v639 = vpop.permute.xlu0 %638
    %640 = vrot.lane.b32.xlu0 %v633, 112
    %v641 = vpop.permute.xlu0 %640
    %642 = vrot.lane.b32.xlu0 %v634, 112
    %v643 = vpop.permute.xlu0 %642
    %v644 = vsel %vm571, %v639, %v641
    %v645 = vsel %vm571, %v641, %v643
    %v649 = vadd.f32 %v601, %v644
    %v650 = vadd.f32 %v602, %v645
    %v651 = vadd.f32 %v603, %v643
    %s652 = scalar_lea.vmem [#allocation2], 4
    %v653 = vld [vmem:[%s652] ss:$4 sm:$0x3]
    %654 = vset.pattern.permute.xlu0 4
    %655 = vperm.xlu0 %654, %v101
    %v656 = vpop.permute.xlu0 %655
    %v659 = vlaneseq
    %v660 = vshrl.u32 %v659, 7
    %v661 = vsub.s32 0, %v660
    %v662 = vrot.slane %v653, %v661
    %v663 = vlaneseq
    %v664 = vshrl.u32 %v663, 7
    %v665 = vsub.s32 1, %v664
    %v666 = vrot.slane %v653, %v665
    %v669 = vmul.f32 %v656, %v662
    %v670 = vmul.f32 %v656, %v666
    %673 = vrot.lane.b32.xlu0 %v669, 111
    %v674 = vpop.permute.xlu0 %673
    %675 = vrot.lane.b32.xlu0 %v670, 111
    %v676 = vpop.permute.xlu0 %675
    %vm677 = vcmask 908288
    %v678 = vsel %vm677, %v674, %v676
    %v682 = vadd.f32 %v625, %v674
    %v683 = vadd.f32 %v626, %v678
    %v684 = vadd.f32 %v627, %v676
    %s685 = scalar_lea.vmem [#allocation2], 5
    %v686 = vld [vmem:[%s685] ss:$4 sm:$0x3]
    %687 = vset.pattern.permute.xlu0 13
    %688 = vperm.xlu0 %687, %v101
    %v689 = vpop.permute.xlu0 %688
    %v692 = vlaneseq
    %v693 = vshrl.u32 %v692, 7
    %v694 = vsub.s32 0, %v693
    %v695 = vrot.slane %v686, %v694
    %v696 = vlaneseq
    %v697 = vshrl.u32 %v696, 7
    %v698 = vsub.s32 1, %v697
    %v699 = vrot.slane %v686, %v698
    %v702 = vmul.f32 %v689, %v695
    %v703 = vmul.f32 %v689, %v699
    %706 = vrot.lane.b32.xlu0 %v702, 111
    %v707 = vpop.permute.xlu0 %706
    %708 = vrot.lane.b32.xlu0 %v703, 111
    %v709 = vpop.permute.xlu0 %708
    %v710 = vsel %vm677, %v707, %v709
    %v714 = vadd.f32 %v649, %v707
    %v715 = vadd.f32 %v650, %v710
    %v716 = vadd.f32 %v651, %v709
    %s717 = scalar_lea.vmem [#allocation2], 6
    %v718 = vld [vmem:[%s717] ss:$4 sm:$0x3]
    %719 = vset.pattern.permute.xlu0 22
    %720 = vperm.xlu0 %719, %v101
    %v721 = vpop.permute.xlu0 %720
    %v724 = vlaneseq
    %v725 = vshrl.u32 %v724, 7
    %v726 = vsub.s32 0, %v725
    %v727 = vrot.slane %v718, %v726
    %v728 = vlaneseq
    %v729 = vshrl.u32 %v728, 7
    %v730 = vsub.s32 1, %v729
    %v731 = vrot.slane %v718, %v730
    %v734 = vmul.f32 %v721, %v727
    %v735 = vmul.f32 %v721, %v731
    %738 = vrot.lane.b32.xlu0 %v734, 111
    %v739 = vpop.permute.xlu0 %738
    %740 = vrot.lane.b32.xlu0 %v735, 111
    %v741 = vpop.permute.xlu0 %740
    %v742 = vsel %vm677, %v739, %v741
    %v746 = vadd.f32 %v682, %v739
    %v747 = vadd.f32 %v683, %v742
    %v748 = vadd.f32 %v684, %v741
    %s749 = scalar_lea.vmem [#allocation2], 7
    %v750 = vld [vmem:[%s749] ss:$4 sm:$0x3]
    %751 = vset.pattern.permute.xlu0 31
    %752 = vperm.xlu0 %751, %v101
    %v753 = vpop.permute.xlu0 %752
    %v756 = vlaneseq
    %v757 = vshrl.u32 %v756, 7
    %v758 = vsub.s32 0, %v757
    %v759 = vrot.slane %v750, %v758
    %v760 = vlaneseq
    %v761 = vshrl.u32 %v760, 7
    %v762 = vsub.s32 1, %v761
    %v763 = vrot.slane %v750, %v762
    %v766 = vmul.f32 %v753, %v759
    %v767 = vmul.f32 %v753, %v763
    %770 = vrot.lane.b32.xlu0 %v766, 111
    %v771 = vpop.permute.xlu0 %770
    %772 = vrot.lane.b32.xlu0 %v767, 111
    %v773 = vpop.permute.xlu0 %772
    %v774 = vsel %vm677, %v771, %v773
    %v778 = vadd.f32 %v714, %v771
    %v779 = vadd.f32 %v715, %v774
    %v780 = vadd.f32 %v716, %v773
    %s781 = scalar_lea.vmem [#allocation4], 4
    %v782 = vld [vmem:[%s781] ss:$4 sm:$0x7]
    %783 = vset.pattern.permute.xlu0 5
    %784 = vperm.xlu0 %783, %v101
    %v785 = vpop.permute.xlu0 %784
    %v788 = vlaneseq
    %v789 = vshrl.u32 %v788, 7
    %v790 = vsub.s32 0, %v789
    %v791 = vrot.slane %v782, %v790
    %v792 = vlaneseq
    %v793 = vshrl.u32 %v792, 7
    %v794 = vsub.s32 1, %v793
    %v795 = vrot.slane %v782, %v794
    %v796 = vlaneseq
    %v797 = vshrl.u32 %v796, 7
    %v798 = vsub.s32 2, %v797
    %v799 = vrot.slane %v782, %v798
    %v803 = vmul.f32 %v785, %v791
    %v804 = vmul.f32 %v785, %v795
    %v805 = vmul.f32 %v785, %v799
    %809 = vrot.lane.b32.xlu0 %v803, 110
    %v810 = vpop.permute.xlu0 %809
    %811 = vrot.lane.b32.xlu0 %v804, 110
    %v812 = vpop.permute.xlu0 %811
    %813 = vrot.lane.b32.xlu0 %v805, 110
    %v814 = vpop.permute.xlu0 %813
    %vm815 = vcmask 900096
    %v816 = vsel %vm815, %v810, %v812
    %v817 = vsel %vm815, %v812, %v814
    %v821 = vadd.f32 %v746, %v810
    %v822 = vadd.f32 %v747, %v816
    %v823 = vadd.f32 %v748, %v817
    %s824 = scalar_lea.vmem [#allocation4], 5
    %v825 = vld [vmem:[%s824] ss:$4 sm:$0x7]
    %826 = vset.pattern.permute.xlu0 14
    %827 = vperm.xlu0 %826, %v101
    %v828 = vpop.permute.xlu0 %827
    %v831 = vlaneseq
    %v832 = vshrl.u32 %v831, 7
    %v833 = vsub.s32 0, %v832
    %v834 = vrot.slane %v825, %v833
    %v835 = vlaneseq
    %v836 = vshrl.u32 %v835, 7
    %v837 = vsub.s32 1, %v836
    %v838 = vrot.slane %v825, %v837
    %v839 = vlaneseq
    %v840 = vshrl.u32 %v839, 7
    %v841 = vsub.s32 2, %v840
    %v842 = vrot.slane %v825, %v841
    %v846 = vmul.f32 %v828, %v834
    %v847 = vmul.f32 %v828, %v838
    %v848 = vmul.f32 %v828, %v842
    %852 = vrot.lane.b32.xlu0 %v846, 110
    %v853 = vpop.permute.xlu0 %852
    %854 = vrot.lane.b32.xlu0 %v847, 110
    %v855 = vpop.permute.xlu0 %854
    %856 = vrot.lane.b32.xlu0 %v848, 110
    %v857 = vpop.permute.xlu0 %856
    %v858 = vsel %vm815, %v853, %v855
    %v859 = vsel %vm815, %v855, %v857
    %v863 = vadd.f32 %v778, %v853
    %v864 = vadd.f32 %v779, %v858
    %v865 = vadd.f32 %v780, %v859
    %s866 = scalar_lea.vmem [#allocation4], 6
    %v867 = vld [vmem:[%s866] ss:$4 sm:$0x7]
    %868 = vset.pattern.permute.xlu0 23
    %869 = vperm.xlu0 %868, %v101
    %v870 = vpop.permute.xlu0 %869
    %v873 = vlaneseq
    %v874 = vshrl.u32 %v873, 7
    %v875 = vsub.s32 0, %v874
    %v876 = vrot.slane %v867, %v875
    %v877 = vlaneseq
    %v878 = vshrl.u32 %v877, 7
    %v879 = vsub.s32 1, %v878
    %v880 = vrot.slane %v867, %v879
    %v881 = vlaneseq
    %v882 = vshrl.u32 %v881, 7
    %v883 = vsub.s32 2, %v882
    %v884 = vrot.slane %v867, %v883
    %v888 = vmul.f32 %v870, %v876
    %v889 = vmul.f32 %v870, %v880
    %v890 = vmul.f32 %v870, %v884
    %894 = vrot.lane.b32.xlu0 %v888, 110
    %v895 = vpop.permute.xlu0 %894
    %896 = vrot.lane.b32.xlu0 %v889, 110
    %v897 = vpop.permute.xlu0 %896
    %898 = vrot.lane.b32.xlu0 %v890, 110
    %v899 = vpop.permute.xlu0 %898
    %v900 = vsel %vm815, %v895, %v897
    %v901 = vsel %vm815, %v897, %v899
    %v905 = vadd.f32 %v821, %v895
    %v906 = vadd.f32 %v822, %v900
    %v907 = vadd.f32 %v823, %v901
    %s908 = scalar_lea.vmem [#allocation4], 7
    %v909 = vld [vmem:[%s908] ss:$4 sm:$0x7]
    %910 = vset.pattern.permute.xlu0 32
    %911 = vperm.xlu0 %910, %v101
    %v912 = vpop.permute.xlu0 %911
    %v915 = vlaneseq
    %v916 = vshrl.u32 %v915, 7
    %v917 = vsub.s32 0, %v916
    %v918 = vrot.slane %v909, %v917
    %v919 = vlaneseq
    %v920 = vshrl.u32 %v919, 7
    %v921 = vsub.s32 1, %v920
    %v922 = vrot.slane %v909, %v921
    %v923 = vlaneseq
    %v924 = vshrl.u32 %v923, 7
    %v925 = vsub.s32 2, %v924
    %v926 = vrot.slane %v909, %v925
    %v930 = vmul.f32 %v912, %v918
    %v931 = vmul.f32 %v912, %v922
    %v932 = vmul.f32 %v912, %v926
    %936 = vrot.lane.b32.xlu0 %v930, 110
    %v937 = vpop.permute.xlu0 %936
    %938 = vrot.lane.b32.xlu0 %v931, 110
    %v939 = vpop.permute.xlu0 %938
    %940 = vrot.lane.b32.xlu0 %v932, 110
    %v941 = vpop.permute.xlu0 %940
    %v942 = vsel %vm815, %v937, %v939
    %v943 = vsel %vm815, %v939, %v941
    %v947 = vadd.f32 %v863, %v937
    %v948 = vadd.f32 %v864, %v942
    %v949 = vadd.f32 %v865, %v943
    %s950 = scalar_lea.vmem [#allocation3], 4
    %v951 = vld [vmem:[%s950] ss:$4 sm:$0x7]
    %952 = vset.pattern.permute.xlu0 6
    %953 = vperm.xlu0 %952, %v101
    %v954 = vpop.permute.xlu0 %953
    %v957 = vlaneseq
    %v958 = vshrl.u32 %v957, 7
    %v959 = vsub.s32 0, %v958
    %v960 = vrot.slane %v951, %v959
    %v961 = vlaneseq
    %v962 = vshrl.u32 %v961, 7
    %v963 = vsub.s32 1, %v962
    %v964 = vrot.slane %v951, %v963
    %v965 = vlaneseq
    %v966 = vshrl.u32 %v965, 7
    %v967 = vsub.s32 2, %v966
    %v968 = vrot.slane %v951, %v967
    %v972 = vmul.f32 %v954, %v960
    %v973 = vmul.f32 %v954, %v964
    %v974 = vmul.f32 %v954, %v968
    %978 = vrot.lane.b32.xlu0 %v972, 96
    %v979 = vpop.permute.xlu0 %978
    %980 = vrot.lane.b32.xlu0 %v973, 96
    %v981 = vpop.permute.xlu0 %980
    %982 = vrot.lane.b32.xlu0 %v974, 96
    %v983 = vpop.permute.xlu0 %982
    %vm984 = vcmask 785408
    %v985 = vsel %vm984, %v979, %v981
    %v986 = vsel %vm984, %v981, %v983
    %v990 = vadd.f32 %v905, %v979
    %v991 = vadd.f32 %v906, %v985
    %v992 = vadd.f32 %v907, %v986
    %s993 = scalar_lea.vmem [#allocation3], 5
    %v994 = vld [vmem:[%s993] ss:$4 sm:$0x7]
    %995 = vset.pattern.permute.xlu0 15
    %996 = vperm.xlu0 %995, %v101
    %v997 = vpop.permute.xlu0 %996
    %v1000 = vlaneseq
    %v1001 = vshrl.u32 %v1000, 7
    %v1002 = vsub.s32 0, %v1001
    %v1003 = vrot.slane %v994, %v1002
    %v1004 = vlaneseq
    %v1005 = vshrl.u32 %v1004, 7
    %v1006 = vsub.s32 1, %v1005
    %v1007 = vrot.slane %v994, %v1006
    %v1008 = vlaneseq
    %v1009 = vshrl.u32 %v1008, 7
    %v1010 = vsub.s32 2, %v1009
    %v1011 = vrot.slane %v994, %v1010
    %v1015 = vmul.f32 %v997, %v1003
    %v1016 = vmul.f32 %v997, %v1007
    %v1017 = vmul.f32 %v997, %v1011
    %1021 = vrot.lane.b32.xlu0 %v1015, 96
    %v1022 = vpop.permute.xlu0 %1021
    %1023 = vrot.lane.b32.xlu0 %v1016, 96
    %v1024 = vpop.permute.xlu0 %1023
    %1025 = vrot.lane.b32.xlu0 %v1017, 96
    %v1026 = vpop.permute.xlu0 %1025
    %v1027 = vsel %vm984, %v1022, %v1024
    %v1028 = vsel %vm984, %v1024, %v1026
    %v1032 = vadd.f32 %v947, %v1022
    %v1033 = vadd.f32 %v948, %v1027
    %v1034 = vadd.f32 %v949, %v1028
    %s1035 = scalar_lea.vmem [#allocation3], 6
    %v1036 = vld [vmem:[%s1035] ss:$4 sm:$0x7]
    %1037 = vset.pattern.permute.xlu0 24
    %1038 = vperm.xlu0 %1037, %v101
    %v1039 = vpop.permute.xlu0 %1038
    %v1042 = vlaneseq
    %v1043 = vshrl.u32 %v1042, 7
    %v1044 = vsub.s32 0, %v1043
    %v1045 = vrot.slane %v1036, %v1044
    %v1046 = vlaneseq
    %v1047 = vshrl.u32 %v1046, 7
    %v1048 = vsub.s32 1, %v1047
    %v1049 = vrot.slane %v1036, %v1048
    %v1050 = vlaneseq
    %v1051 = vshrl.u32 %v1050, 7
    %v1052 = vsub.s32 2, %v1051
    %v1053 = vrot.slane %v1036, %v1052
    %v1057 = vmul.f32 %v1039, %v1045
    %v1058 = vmul.f32 %v1039, %v1049
    %v1059 = vmul.f32 %v1039, %v1053
    %1063 = vrot.lane.b32.xlu0 %v1057, 96
    %v1064 = vpop.permute.xlu0 %1063
    %1065 = vrot.lane.b32.xlu0 %v1058, 96
    %v1066 = vpop.permute.xlu0 %1065
    %1067 = vrot.lane.b32.xlu0 %v1059, 96
    %v1068 = vpop.permute.xlu0 %1067
    %v1069 = vsel %vm984, %v1064, %v1066
    %v1070 = vsel %vm984, %v1066, %v1068
    %v1074 = vadd.f32 %v990, %v1064
    %v1075 = vadd.f32 %v991, %v1069
    %v1076 = vadd.f32 %v992, %v1070
    %s1077 = scalar_lea.vmem [#allocation3], 7
    %v1078 = vld [vmem:[%s1077] ss:$4 sm:$0x7]
    %1079 = vset.pattern.permute.xlu0 33
    %1080 = vperm.xlu0 %1079, %v101
    %v1081 = vpop.permute.xlu0 %1080
    %v1084 = vlaneseq
    %v1085 = vshrl.u32 %v1084, 7
    %v1086 = vsub.s32 0, %v1085
    %v1087 = vrot.slane %v1078, %v1086
    %v1088 = vlaneseq
    %v1089 = vshrl.u32 %v1088, 7
    %v1090 = vsub.s32 1, %v1089
    %v1091 = vrot.slane %v1078, %v1090
    %v1092 = vlaneseq
    %v1093 = vshrl.u32 %v1092, 7
    %v1094 = vsub.s32 2, %v1093
    %v1095 = vrot.slane %v1078, %v1094
    %v1099 = vmul.f32 %v1081, %v1087
    %v1100 = vmul.f32 %v1081, %v1091
    %v1101 = vmul.f32 %v1081, %v1095
    %1105 = vrot.lane.b32.xlu0 %v1099, 96
    %v1106 = vpop.permute.xlu0 %1105
    %1107 = vrot.lane.b32.xlu0 %v1100, 96
    %v1108 = vpop.permute.xlu0 %1107
    %1109 = vrot.lane.b32.xlu0 %v1101, 96
    %v1110 = vpop.permute.xlu0 %1109
    %v1111 = vsel %vm984, %v1106, %v1108
    %v1112 = vsel %vm984, %v1108, %v1110
    %v1116 = vadd.f32 %v1032, %v1106
    %v1117 = vadd.f32 %v1033, %v1111
    %v1118 = vadd.f32 %v1034, %v1112
    %s1119 = scalar_lea.vmem [#allocation2], 4
    %v1120 = vld [vmem:[%s1119] ss:$4 sm:$0x7]
    %1121 = vset.pattern.permute.xlu0 7
    %1122 = vperm.xlu0 %1121, %v101
    %v1123 = vpop.permute.xlu0 %1122
    %v1126 = vlaneseq
    %v1127 = vshrl.u32 %v1126, 7
    %v1128 = vsub.s32 0, %v1127
    %v1129 = vrot.slane %v1120, %v1128
    %v1130 = vlaneseq
    %v1131 = vshrl.u32 %v1130, 7
    %v1132 = vsub.s32 1, %v1131
    %v1133 = vrot.slane %v1120, %v1132
    %v1134 = vlaneseq
    %v1135 = vshrl.u32 %v1134, 7
    %v1136 = vsub.s32 2, %v1135
    %v1137 = vrot.slane %v1120, %v1136
    %v1141 = vmul.f32 %v1123, %v1129
    %v1142 = vmul.f32 %v1123, %v1133
    %v1143 = vmul.f32 %v1123, %v1137
    %1147 = vrot.lane.b32.xlu0 %v1141, 95
    %v1148 = vpop.permute.xlu0 %1147
    %1149 = vrot.lane.b32.xlu0 %v1142, 95
    %v1150 = vpop.permute.xlu0 %1149
    %1151 = vrot.lane.b32.xlu0 %v1143, 95
    %v1152 = vpop.permute.xlu0 %1151
    %vm1153 = vcmask 777216
    %v1154 = vsel %vm1153, %v1148, %v1150
    %v1155 = vsel %vm1153, %v1150, %v1152
    %v1159 = vadd.f32 %v1074, %v1148
    %v1160 = vadd.f32 %v1075, %v1154
    %v1161 = vadd.f32 %v1076, %v1155
    %s1162 = scalar_lea.vmem [#allocation2], 5
    %v1163 = vld [vmem:[%s1162] ss:$4 sm:$0x7]
    %1164 = vset.pattern.permute.xlu0 16
    %1165 = vperm.xlu0 %1164, %v101
    %v1166 = vpop.permute.xlu0 %1165
    %v1169 = vlaneseq
    %v1170 = vshrl.u32 %v1169, 7
    %v1171 = vsub.s32 0, %v1170
    %v1172 = vrot.slane %v1163, %v1171
    %v1173 = vlaneseq
    %v1174 = vshrl.u32 %v1173, 7
    %v1175 = vsub.s32 1, %v1174
    %v1176 = vrot.slane %v1163, %v1175
    %v1177 = vlaneseq
    %v1178 = vshrl.u32 %v1177, 7
    %v1179 = vsub.s32 2, %v1178
    %v1180 = vrot.slane %v1163, %v1179
    %v1184 = vmul.f32 %v1166, %v1172
    %v1185 = vmul.f32 %v1166, %v1176
    %v1186 = vmul.f32 %v1166, %v1180
    %1190 = vrot.lane.b32.xlu0 %v1184, 95
    %v1191 = vpop.permute.xlu0 %1190
    %1192 = vrot.lane.b32.xlu0 %v1185, 95
    %v1193 = vpop.permute.xlu0 %1192
    %1194 = vrot.lane.b32.xlu0 %v1186, 95
    %v1195 = vpop.permute.xlu0 %1194
    %v1196 = vsel %vm1153, %v1191, %v1193
    %v1197 = vsel %vm1153, %v1193, %v1195
    %v1201 = vadd.f32 %v1116, %v1191
    %v1202 = vadd.f32 %v1117, %v1196
    %v1203 = vadd.f32 %v1118, %v1197
    %s1204 = scalar_lea.vmem [#allocation2], 6
    %v1205 = vld [vmem:[%s1204] ss:$4 sm:$0x7]
    %1206 = vset.pattern.permute.xlu0 25
    %1207 = vperm.xlu0 %1206, %v101
    %v1208 = vpop.permute.xlu0 %1207
    %v1211 = vlaneseq
    %v1212 = vshrl.u32 %v1211, 7
    %v1213 = vsub.s32 0, %v1212
    %v1214 = vrot.slane %v1205, %v1213
    %v1215 = vlaneseq
    %v1216 = vshrl.u32 %v1215, 7
    %v1217 = vsub.s32 1, %v1216
    %v1218 = vrot.slane %v1205, %v1217
    %v1219 = vlaneseq
    %v1220 = vshrl.u32 %v1219, 7
    %v1221 = vsub.s32 2, %v1220
    %v1222 = vrot.slane %v1205, %v1221
    %v1226 = vmul.f32 %v1208, %v1214
    %v1227 = vmul.f32 %v1208, %v1218
    %v1228 = vmul.f32 %v1208, %v1222
    %1232 = vrot.lane.b32.xlu0 %v1226, 95
    %v1233 = vpop.permute.xlu0 %1232
    %1234 = vrot.lane.b32.xlu0 %v1227, 95
    %v1235 = vpop.permute.xlu0 %1234
    %1236 = vrot.lane.b32.xlu0 %v1228, 95
    %v1237 = vpop.permute.xlu0 %1236
    %v1238 = vsel %vm1153, %v1233, %v1235
    %v1239 = vsel %vm1153, %v1235, %v1237
    %v1243 = vadd.f32 %v1159, %v1233
    %v1244 = vadd.f32 %v1160, %v1238
    %v1245 = vadd.f32 %v1161, %v1239
    %s1246 = scalar_lea.vmem [#allocation2], 7
    %v1247 = vld [vmem:[%s1246] ss:$4 sm:$0x7]
    %1248 = vset.pattern.permute.xlu0 34
    %1249 = vperm.xlu0 %1248, %v101
    %v1250 = vpop.permute.xlu0 %1249
    %v1253 = vlaneseq
    %v1254 = vshrl.u32 %v1253, 7
    %v1255 = vsub.s32 0, %v1254
    %v1256 = vrot.slane %v1247, %v1255
    %v1257 = vlaneseq
    %v1258 = vshrl.u32 %v1257, 7
    %v1259 = vsub.s32 1, %v1258
    %v1260 = vrot.slane %v1247, %v1259
    %v1261 = vlaneseq
    %v1262 = vshrl.u32 %v1261, 7
    %v1263 = vsub.s32 2, %v1262
    %v1264 = vrot.slane %v1247, %v1263
    %v1268 = vmul.f32 %v1250, %v1256
    %v1269 = vmul.f32 %v1250, %v1260
    %v1270 = vmul.f32 %v1250, %v1264
    %1274 = vrot.lane.b32.xlu0 %v1268, 95
    %v1275 = vpop.permute.xlu0 %1274
    %1276 = vrot.lane.b32.xlu0 %v1269, 95
    %v1277 = vpop.permute.xlu0 %1276
    %1278 = vrot.lane.b32.xlu0 %v1270, 95
    %v1279 = vpop.permute.xlu0 %1278
    %v1280 = vsel %vm1153, %v1275, %v1277
    %v1281 = vsel %vm1153, %v1277, %v1279
    %v1285 = vadd.f32 %v1201, %v1275
    %v1286 = vadd.f32 %v1202, %v1280
    %v1287 = vadd.f32 %v1203, %v1281
    %1288 = vset.pattern.permute.xlu0 8
    %1289 = vperm.xlu0 %1288, %v101
    %v1290 = vpop.permute.xlu0 %1289
    %v1292 = vmul.f32 %v1290, %v791
    %v1293 = vmul.f32 %v1290, %v795
    %v1294 = vmul.f32 %v1290, %v799
    %1298 = vrot.lane.b32.xlu0 %v1292, 94
    %v1299 = vpop.permute.xlu0 %1298
    %1300 = vrot.lane.b32.xlu0 %v1293, 94
    %v1301 = vpop.permute.xlu0 %1300
    %1302 = vrot.lane.b32.xlu0 %v1294, 94
    %v1303 = vpop.permute.xlu0 %1302
    %vm1304 = vcmask 769024
    %v1305 = vsel %vm1304, %v1299, %v1301
    %v1306 = vsel %vm1304, %v1301, %v1303
    %v1310 = vadd.f32 %v1243, %v1299
    %v1311 = vadd.f32 %v1244, %v1305
    %v1312 = vadd.f32 %v1245, %v1306
    %1313 = vset.pattern.permute.xlu0 17
    %1314 = vperm.xlu0 %1313, %v101
    %v1315 = vpop.permute.xlu0 %1314
    %v1317 = vmul.f32 %v1315, %v834
    %v1318 = vmul.f32 %v1315, %v838
    %v1319 = vmul.f32 %v1315, %v842
    %1323 = vrot.lane.b32.xlu0 %v1317, 94
    %v1324 = vpop.permute.xlu0 %1323
    %1325 = vrot.lane.b32.xlu0 %v1318, 94
    %v1326 = vpop.permute.xlu0 %1325
    %1327 = vrot.lane.b32.xlu0 %v1319, 94
    %v1328 = vpop.permute.xlu0 %1327
    %v1329 = vsel %vm1304, %v1324, %v1326
    %v1330 = vsel %vm1304, %v1326, %v1328
    %v1334 = vadd.f32 %v1285, %v1324
    %v1335 = vadd.f32 %v1286, %v1329
    %v1336 = vadd.f32 %v1287, %v1330
    %1337 = vset.pattern.permute.xlu0 26
    %1338 = vperm.xlu0 %1337, %v101
    %v1339 = vpop.permute.xlu0 %1338
    %v1341 = vmul.f32 %v1339, %v876
    %v1342 = vmul.f32 %v1339, %v880
    %v1343 = vmul.f32 %v1339, %v884
    %1347 = vrot.lane.b32.xlu0 %v1341, 94
    %v1348 = vpop.permute.xlu0 %1347
    %1349 = vrot.lane.b32.xlu0 %v1342, 94
    %v1350 = vpop.permute.xlu0 %1349
    %1351 = vrot.lane.b32.xlu0 %v1343, 94
    %v1352 = vpop.permute.xlu0 %1351
    %v1353 = vsel %vm1304, %v1348, %v1350
    %v1354 = vsel %vm1304, %v1350, %v1352
    %v1358 = vadd.f32 %v1310, %v1348
    %v1359 = vadd.f32 %v1311, %v1353
    %v1360 = vadd.f32 %v1312, %v1354
    %1361 = vset.pattern.permute.xlu0 35
    %1362 = vperm.xlu0 %1361, %v101
    %v1363 = vpop.permute.xlu0 %1362
    %v1365 = vmul.f32 %v1363, %v918
    %v1366 = vmul.f32 %v1363, %v922
    %v1367 = vmul.f32 %v1363, %v926
    %1371 = vrot.lane.b32.xlu0 %v1365, 94
    %v1372 = vpop.permute.xlu0 %1371
    %1373 = vrot.lane.b32.xlu0 %v1366, 94
    %v1374 = vpop.permute.xlu0 %1373
    %1375 = vrot.lane.b32.xlu0 %v1367, 94
    %v1376 = vpop.permute.xlu0 %1375
    %v1377 = vsel %vm1304, %v1372, %v1374
    %v1378 = vsel %vm1304, %v1374, %v1376
    %v1382 = vadd.f32 %v1334, %v1372
    %v1383 = vadd.f32 %v1335, %v1377
    %v1384 = vadd.f32 %v1336, %v1378
    %v1385 = vadd.f32 %v1358, %v1382
    %v1386 = vadd.f32 %v1359, %v1383
    %v1387 = vadd.f32 %v1360, %v1384
    %v1388 = vtanh.pop %v1385
    %v1389 = vtanh.pop %v1386
    %v1390 = vtanh.pop %v1387
    %v1394 = vcombine.low %v1388, %v1389
    %1395 = vrot.lane.b32.xlu0 %v1394, 17
    %v1396 = vpop.permute.xlu0 %1395
    %1397 = vrot.lane.b32.xlu0 %v1390, 17
    %v1398 = vpop.permute.xlu0 %1397
    %v1399 = vrot.slane %v1396, 4
    %v1400 = vrot.slane %v1398, 4
    %vm1401 = vcmask 1043456
    %v1402 = vsel %vm1401, %v1399, %v1400
    %vm1403 = vcmask 138240
    %v1404 = vsel %vm1403, %v1396, %v1402
    %1406 = vst [vmem:[#allocation9] sm:$0x77] %v1404
    // Predicated region
    $region14: #{tpu_custom_call.1} parent=1 // pred_check
      _
    $region15: #{tpu_custom_call.1} parent=1 // pred_check_branch
      %1408 = sbr.rel (0) target = $region17
    $region16: #{tpu_custom_call.1} parent=1 // pred_region
      %s1410 = ssub.s32 128, 128
      %1411 = vsyncadd [#allocation8], %s1410
      %s1413 = sshll.u32 [#allocation9], 4
      %s1414 = int_to_ptr.vmem [resolvable:$true] %s1413
      %1416 = dma.vmem_to_hbm [thread:$0]  %s1414, 128, %s2, [#allocation8]
    $region17: #{tpu_custom_call.1} parent=1 // pred_fallthru
      _
    // Predicated region
    $region18: #{tpu_custom_call.1} parent=1 // pred_check
      _
    $region19: #{tpu_custom_call.1} parent=1 // pred_check_branch
      %1418 = sbr.rel (0) target = $region21
    $region20: #{tpu_custom_call.1} parent=1 // pred_region
      %1419 = dma.done [#allocation8], 128
    $region21: #{tpu_custom_call.1} parent=1 // pred_fallthru
      _
    %1420 = vsyncpa [#allocation7], 1
    %1421 = vsyncpa [#allocation8], 1
  %1422 = vsyncmov [#allocation5]
  %s1423 = vpop.sfrf %1422
  %p1424 = scmp.eq.s32.totalorder %s1423, 0
  %p1425 = pneg %p1424
  %1427 = shalt.err (%p1425)

</llo_original>
